<compile_context>
chip_gen: v5e
topology: v5e:2x2
jax: 0.10.0
libtpu: 0.0.40
codegen_flags: <defaults>
</compile_context>

<pallas_src>
import math

import jax
import jax.numpy as jnp
from jax.experimental import pallas as pl
from jax.experimental.pallas import tpu as pltpu


def _mlp_kernel(x_ref, w1_ref, b1_ref, w2_ref, b2_ref, o_ref):
    """One (batch, time-tile) block: y = fc2(SiLU(fc1(x))).

    x_ref : [1, C, TT]   f32 activation tile (original [N, C, T] layout)
    w1_ref: [H, C]       bf16 fc1 weight (Conv1d weight, already [out, in])
    b1_ref: [H, 1]       f32  fc1 bias
    w2_ref: [Cout, H]    bf16 fc2 weight
    b2_ref: [Cout, 1]    f32  fc2 bias
    o_ref : [1, Cout, TT] f32 output tile
    """
    x = x_ref[0].astype(jnp.bfloat16)                                   # cast in-kernel (VPU)
    h = jnp.dot(w1_ref[...], x,
                preferred_element_type=jnp.float32) + b1_ref[...]      # [H, TT], MXU f32 acc
    h = h * jax.nn.sigmoid(h)                                           # SiLU in f32
    y = jnp.dot(w2_ref[...], h.astype(jnp.bfloat16),
                preferred_element_type=jnp.float32) + b2_ref[...]      # [Cout, TT], MXU f32 acc
    # Dropout(p=0.0) is the identity -> nothing to do.
    o_ref[0] = y.astype(o_ref.dtype)


def _pick_time_tile(T):
    """Largest lane-dense (multiple-of-128) tile dividing T, VMEM-capped."""
    for cand in (2048, 1024, 512, 256, 128):
        if T % cand == 0:
            return cand
    # Awkward / small T: one full-T block (still legal: equals the array dim).
    return T


def _vmem_limit_bytes(C, H, Cout, TT):
    """Rough working-set estimate with headroom; safe on all generations."""
    act = 2 * C * TT * 4 + 2 * Cout * TT * 4 + H * TT * 4        # dbl-buffered x/y + f32 h
    wgt = 2 * (H * C + Cout * H) * 2 + 2 * (H + Cout) * 128 * 4  # resident weights + padded biases
    need = act + wgt
    # >= 32 MiB to beat v5e's 16 MiB default scoped limit; <= 48 MiB to stay
    # clear of v7x's 64 MiB physical VMEM.
    return int(min(max(2 * need, 32 * 1024 * 1024), 48 * 1024 * 1024))


def mlp_forward(x, params, *, time_tile=None):
    """Mlp with 1x1 convolutions. x: [N, C, T] f32 -> [N, Cout, T] f32."""
    N, C, T = x.shape
    w1, b1, w2, b2 = params["w1"], params["b1"], params["w2"], params["b2"]
    H, Cin = w1.shape
    Cout = w2.shape[0]
    assert Cin == C and w2.shape[1] == H

    TT = time_tile or _pick_time_tile(T)
    assert T % TT == 0

    # Weights pre-cast to bf16 once (tiny); biases to f32 column vectors so they
    # broadcast along the lane (time) axis of the [rows, TT] matmul results.
    w1b = jnp.asarray(w1).astype(jnp.bfloat16)          # [H, C]
    w2b = jnp.asarray(w2).astype(jnp.bfloat16)          # [Cout, H]
    b1c = jnp.asarray(b1, jnp.float32).reshape(H, 1)
    b2c = jnp.asarray(b2, jnp.float32).reshape(Cout, 1)

    def const_spec(shape):
        # Grid-invariant operand: DMA'd once, resident across all grid steps.
        return pl.BlockSpec(shape, lambda n, t: (0, 0))

    return pl.pallas_call(
        _mlp_kernel,
        out_shape=jax.ShapeDtypeStruct((N, Cout, T), jnp.float32),
        grid=(N, T // TT),
        in_specs=[
            pl.BlockSpec((1, C, TT), lambda n, t: (n, 0, t)),   # activation tile (f32)
            const_spec((H, C)),                                  # fc1 weight
            const_spec((H, 1)),                                  # fc1 bias
            const_spec((Cout, H)),                               # fc2 weight
            const_spec((Cout, 1)),                               # fc2 bias
        ],
        out_specs=pl.BlockSpec((1, Cout, TT), lambda n, t: (n, 0, t)),
        compiler_params=pltpu.CompilerParams(
            dimension_semantics=("parallel", "parallel"),
            vmem_limit_bytes=_vmem_limit_bytes(C, H, Cout, TT)),
    )(jnp.asarray(x, jnp.float32), w1b, b1c, w2b, b2c)


def mlp_reference(x, params):
    """Pure-JAX f32 reference matching the PyTorch module (Conv1d k=1 == linear)."""
    h = jnp.einsum("nct,hc->nht", x, params["w1"]) + params["b1"][None, :, None]
    h = h * jax.nn.sigmoid(h)
    y = jnp.einsum("nht,oh->not", h, params["w2"]) + params["b2"][None, :, None]
    return y


def init_params(key, in_features, hidden_features, out_features):
    # Conv1d(k=1) weight is [out, in] (trailing kernel dim of 1 dropped);
    # uniform(-1/sqrt(fan_in), 1/sqrt(fan_in)) like PyTorch's default init.
    k1, k2, k3, k4 = jax.random.split(key, 4)
    bnd1 = 1.0 / math.sqrt(in_features)
    bnd2 = 1.0 / math.sqrt(hidden_features)
    u = lambda k, shp, b: jax.random.uniform(k, shp, jnp.float32, -b, b)
    return {
        "w1": u(k1, (hidden_features, in_features), bnd1),
        "b1": u(k2, (hidden_features,), bnd1),
        "w2": u(k3, (out_features, hidden_features), bnd2),
        "b2": u(k4, (out_features,), bnd2),
    }


if __name__ == "__main__":
    key = jax.random.PRNGKey(0)
    # in_features = out_features = 128, hidden_features = 256, seq len T = 128:
    # lane-dense (multiples of 128) and MXU-friendly in the [C, T] tile layout.
    N, C, H, T = 2, 128, 256, 128

    kx, kp = jax.random.split(key)
    x = jax.random.normal(kx, (N, C, T), dtype=jnp.float32)
    params = init_params(kp, C, H, C)

    out = jax.block_until_ready(mlp_forward(x, params))
    assert out.shape == (N, C, T)
    assert bool(jnp.all(jnp.isfinite(out)))

    # Sanity-check against the f32 reference (bf16 MXU inputs, f32 accumulation).
    ref = jax.block_until_ready(mlp_reference(x, params))
    max_err = float(jnp.max(jnp.abs(out - ref)))
    assert max_err < 2e-2, f"max abs error {max_err}"

    print("KERNEL_OK")
</pallas_src>

<mosaic_0001>
module attributes {stable_mosaic.version = 11 : i64} {
  func.func @_mlp_kernel(%arg0: i32, %arg1: i32, %arg2: memref<1x128x128xf32, #tpu.memory_space<vmem>>, %arg3: memref<256x128xbf16, #tpu.memory_space<vmem>>, %arg4: memref<256x1xf32, #tpu.memory_space<vmem>>, %arg5: memref<128x256xbf16, #tpu.memory_space<vmem>>, %arg6: memref<128x1xf32, #tpu.memory_space<vmem>>, %arg7: memref<1x128x128xf32, #tpu.memory_space<vmem>>) attributes {dimension_semantics = [#tpu.dimension_semantics<parallel>, #tpu.dimension_semantics<parallel>], iteration_bounds = array<i64: 2, 1>, scalar_prefetch = 0 : i64, scratch_operands = 0 : i64, tpu.core_type = #tpu.core_type<tc>, window_params = [{transform_indices = @transform_0, window_bounds = array<i64: 1, 128, 128>}, {pipeline_mode = #tpu.pipeline_mode<synchronous>, transform_indices = @transform_1, window_bounds = array<i64: 256, 128>}, {pipeline_mode = #tpu.pipeline_mode<synchronous>, transform_indices = @transform_2, window_bounds = array<i64: 256, 1>}, {pipeline_mode = #tpu.pipeline_mode<synchronous>, transform_indices = @transform_3, window_bounds = array<i64: 128, 256>}, {pipeline_mode = #tpu.pipeline_mode<synchronous>, transform_indices = @transform_4, window_bounds = array<i64: 128, 1>}, {transform_indices = @transform_5, window_bounds = array<i64: 1, 128, 128>}]} {
    %c0 = arith.constant 0 : index
    %c0_0 = arith.constant 0 : index
    %c0_1 = arith.constant 0 : index
    %0 = vector.load %arg2[%c0, %c0_0, %c0_1] : memref<1x128x128xf32, #tpu.memory_space<vmem>>, vector<1x128x128xf32>
    %1 = vector.shape_cast %0 : vector<1x128x128xf32> to vector<128x128xf32>
    %2 = arith.truncf %1 : vector<128x128xf32> to vector<128x128xbf16>
    %c0_2 = arith.constant 0 : index
    %c0_3 = arith.constant 0 : index
    %3 = vector.load %arg3[%c0_2, %c0_3] : memref<256x128xbf16, #tpu.memory_space<vmem>>, vector<256x128xbf16>
    %cst = arith.constant dense<0.000000e+00> : vector<256x128xf32>
    %4 = tpu.matmul %3, %2, %cst {dimension_numbers = #tpu.dot_dimension_numbers<[1], [0], [0], [1], [0, 0, 1, 1], [], []>} : vector<256x128xbf16>, vector<128x128xbf16>, vector<256x128xf32> -> vector<256x128xf32>
    %c0_4 = arith.constant 0 : index
    %c0_5 = arith.constant 0 : index
    %5 = vector.load %arg4[%c0_4, %c0_5] : memref<256x1xf32, #tpu.memory_space<vmem>>, vector<256x1xf32>
    %6 = vector.broadcast %5 : vector<256x1xf32> to vector<256x128xf32>
    %7 = arith.addf %4, %6 : vector<256x128xf32>
    %8 = arith.negf %7 : vector<256x128xf32>
    %9 = math.exp %8 : vector<256x128xf32>
    %cst_6 = arith.constant 1.000000e+00 : f32
    %10 = vector.broadcast %cst_6 : f32 to vector<256x128xf32>
    %11 = arith.addf %10, %9 : vector<256x128xf32>
    %12 = arith.divf %10, %11 : vector<256x128xf32>
    %13 = arith.mulf %7, %12 : vector<256x128xf32>
    %c0_7 = arith.constant 0 : index
    %c0_8 = arith.constant 0 : index
    %14 = vector.load %arg5[%c0_7, %c0_8] : memref<128x256xbf16, #tpu.memory_space<vmem>>, vector<128x256xbf16>
    %15 = arith.truncf %13 : vector<256x128xf32> to vector<256x128xbf16>
    %cst_9 = arith.constant dense<0.000000e+00> : vector<128x128xf32>
    %16 = tpu.matmul %14, %15, %cst_9 {dimension_numbers = #tpu.dot_dimension_numbers<[1], [0], [0], [1], [0, 0, 1, 1], [], []>} : vector<128x256xbf16>, vector<256x128xbf16>, vector<128x128xf32> -> vector<128x128xf32>
    %c0_10 = arith.constant 0 : index
    %c0_11 = arith.constant 0 : index
    %17 = vector.load %arg6[%c0_10, %c0_11] : memref<128x1xf32, #tpu.memory_space<vmem>>, vector<128x1xf32>
    %18 = vector.broadcast %17 : vector<128x1xf32> to vector<128x128xf32>
    %19 = arith.addf %16, %18 : vector<128x128xf32>
    %c0_12 = arith.constant 0 : index
    %c0_13 = arith.constant 0 : index
    %c0_14 = arith.constant 0 : index
    %20 = vector.load %arg7[%c0_12, %c0_13, %c0_14] : memref<1x128x128xf32, #tpu.memory_space<vmem>>, vector<1x128x128xf32>
    %21 = vector.shape_cast %20 : vector<1x128x128xf32> to vector<128x128xf32>
    %22 = vector.shape_cast %19 : vector<128x128xf32> to vector<1x128x128xf32>
    tpu.vector_store %arg7[%c0_12, %c0_13, %c0_14], %22 {strides = array<i32>} : memref<1x128x128xf32, #tpu.memory_space<vmem>>, vector<1x128x128xf32>,
    return
  }
  func.func @transform_0(%arg0: i32, %arg1: i32) -> (i32, i32, i32) {
    %c0_i32 = arith.constant 0 : i32
    %c0_i32_0 = arith.constant 0 : i32
    return %arg0, %c0_i32, %arg1 : i32, i32, i32
  }
  func.func @transform_1(%arg0: i32, %arg1: i32) -> (i32, i32) {
    %c0_i32 = arith.constant 0 : i32
    %c0_i32_0 = arith.constant 0 : i32
    %c0_i32_1 = arith.constant 0 : i32
    return %c0_i32, %c0_i32_0 : i32, i32
  }
  func.func @transform_2(%arg0: i32, %arg1: i32) -> (i32, i32) {
    %c0_i32 = arith.constant 0 : i32
    %c0_i32_0 = arith.constant 0 : i32
    %c0_i32_1 = arith.constant 0 : i32
    return %c0_i32, %c0_i32_0 : i32, i32
  }
  func.func @transform_3(%arg0: i32, %arg1: i32) -> (i32, i32) {
    %c0_i32 = arith.constant 0 : i32
    %c0_i32_0 = arith.constant 0 : i32
    %c0_i32_1 = arith.constant 0 : i32
    return %c0_i32, %c0_i32_0 : i32, i32
  }
  func.func @transform_4(%arg0: i32, %arg1: i32) -> (i32, i32) {
    %c0_i32 = arith.constant 0 : i32
    %c0_i32_0 = arith.constant 0 : i32
    %c0_i32_1 = arith.constant 0 : i32
    return %c0_i32, %c0_i32_0 : i32, i32
  }
  func.func @transform_5(%arg0: i32, %arg1: i32) -> (i32, i32, i32) {
    %c0_i32 = arith.constant 0 : i32
    %c0_i32_0 = arith.constant 0 : i32
    return %arg0, %c0_i32, %arg1 : i32, i32, i32
  }
}

</mosaic_0001>

<llo_original>
// kernel: tpu_custom_call.1
$region0: #{tpu_custom_call.1}
  #allocation0 [shape = 'u32[]', space=smem, size = 0x4, offset = 0x4, fixed_abs, tag = 'smem constant byte address 0x4 - core index']
  #allocation1 [shape = 'u32[72,128]{1,0:T(1,128)}', space=vmem, size = 0x9000, scoped, tag = 'internal scratch']
  %s0 = inlined_call_operand.vmem [shape: f32[2,128,128], index: 0, kind: input, shape index: {}]
  %s1 = inlined_call_operand.vmem [shape: bf16[256,128], index: 1, kind: input, shape index: {}]
  %s2 = inlined_call_operand.vmem [shape: f32[256,1], index: 2, kind: input, shape index: {}]
  %s3 = inlined_call_operand.hbm [shape: bf16[128,256], index: 3, kind: input, shape index: {}]
  %s4 = inlined_call_operand.vmem [shape: f32[128,1], index: 4, kind: input, shape index: {}]
  %s5 = inlined_call_operand.hbm [shape: f32[2,128,128], index: 5, kind: output, shape index: {}]
  %s6 = sld [smem:[#allocation0]]
  $region57: #{tpu_custom_call.1} parent=0
    _
  %s8 = ssub.s32 1, %s6
  %s9 = scalar_select 0, %s8, %s6
  $region1: #{tpu_custom_call.1} parent=0
    #allocation2 [shape = 'u8[65536]{0}', space=vmem, size = 0x10000, scoped, tag = 'input window, operand 3, single buffered']
    #allocation3 [shape = 's32[2]{0}', space=sflag, size = 0x8, scoped, tag = 'scoped memory for tpu_custom_call.1']
    #allocation4 [shape = 's32[2]{0}', space=sflag, size = 0x8, scoped, tag = 'scoped memory for tpu_custom_call.1']
    #allocation5 [shape = 'u8[131072]{0}', space=vmem, size = 0x20000, scoped, tag = 'output window, operand 0']
    %10 = vsyncpa [#allocation3], 0
    %11 = vsyncpa [#allocation4], 0
    %s12 = scalar_lea.sflag [#allocation4], 1
    %13 = vsyncpa %s12, 0
    loop: start=0, step=1, limit=4
    $region2: #{tpu_custom_call.1} parent=1 // loop_pre_header
      _
    $region3: #{tpu_custom_call.1} parent=1 // loop_header
      %s15 = sphi 0, %s19
      %p16 = scmp.ge.s32.totalorder %s15, 4
      %s22 = sphi 0, %s34
      %s23 = sphi 0, %s30
      %s24 = sphi 0, %s22
      %s25 = sphi 0, %s23
      %s26 = sphi 0, %s24
      %s27 = sphi 0, %s25
      %s39 = sphi 0, %s41
      %s42 = sphi 0, %s39
      %s43 = sphi 0, %s42
      %s59 = sphi 0, %s43
      %s63 = sphi 0, %s63
      %s65 = sphi 0, %s63
      %s66 = sphi 0, %s65
      %s80 = sphi 0, %s66
      %s84 = sphi 0, %s84
      %s86 = sphi 0, %s84
      %s87 = sphi 0, %s86
      %s101 = sphi 0, %s87
      %s105 = sphi 0, %s105
      %s107 = sphi 0, %s105
      %s108 = sphi 0, %s107
      %s122 = sphi 0, %s108
      %s126 = sphi 0, %s126
      %s128 = sphi 0, %s126
      %s129 = sphi 0, %s128
      %s143 = sphi 0, %s129
      %s151 = sphi 0, %s153
      %s154 = sphi 0, %s151
      %s155 = sphi 0, %s154
      %s171 = sphi 0, %s155
    $region4: #{tpu_custom_call.1} parent=1 // loop_header_branch
      %18 = sbr.rel (%p16) target = $region8
    $region5: #{tpu_custom_call.1} parent=1 // loop_body
      %s20 = ssub.s32 %s15, 1
      %s21 = ssub.s32 %s15, 2
      %s28 = sadd.s32 1, %s23
      %p29 = scmp.ge.s32.totalorder %s28, 1
      %s30 = scalar_select %p29, 0, %s28
      %s31 = sadd.s32 1, %s22
      %s32 = scalar_select %p29, %s31, %s22
      %p33 = scmp.ge.s32.totalorder %s32, 2
      %s34 = scalar_select %p33, 0, %s32
      %s35 = ssub.s32 %s22, %s34
      %s36 = ssub.s32 %s23, %s30
      %s37 = sor.u32 %s35, %s36
      %p38 = scmp.eq.s32.totalorder %s37, 0
      %s40 = sadd.s32 %s39, 1
      %s41 = scalar_select %p38, %s39, %s40
      %p44 = pneg %p38
      %p45 = scmp.eq.s32.totalorder %s15, 1
      %p46 = por %p44, %p45
      %p47 = scmp.ne.s32.totalorder %s39, %s42
      %p48 = scmp.eq.s32.totalorder %s15, 0
      %p49 = por %p47, %p48
      %p50 = scmp.ne.s32.totalorder %s39, %s42
      %p51 = scmp.eq.s32.totalorder %s20, 1
      %p52 = por %p50, %p51
      %p53 = scmp.ne.s32.totalorder %s42, %s43
      %p54 = scmp.eq.s32.totalorder %s20, 0
      %p55 = por %p53, %p54
      %p56 = scmp.ne.s32.totalorder %s42, %s43
      %p57 = scmp.eq.s32.totalorder %s21, 1
      %p58 = por %p56, %p57
      %p60 = scmp.ne.s32.totalorder %s43, %s59
      %p61 = scmp.eq.s32.totalorder %s21, 0
      %p62 = por %p60, %p61
      %s64 = sadd.s32 %s63, 1
      %p67 = scmp.eq.s32.totalorder %s15, 1
      %p68 = scmp.ne.s32.totalorder %s63, %s65
      %p69 = scmp.eq.s32.totalorder %s15, 0
      %p70 = por %p68, %p69
      %p71 = scmp.ne.s32.totalorder %s63, %s65
      %p72 = scmp.eq.s32.totalorder %s20, 1
      %p73 = por %p71, %p72
      %p74 = scmp.ne.s32.totalorder %s65, %s66
      %p75 = scmp.eq.s32.totalorder %s20, 0
      %p76 = por %p74, %p75
      %p77 = scmp.ne.s32.totalorder %s65, %s66
      %p78 = scmp.eq.s32.totalorder %s21, 1
      %p79 = por %p77, %p78
      %p81 = scmp.ne.s32.totalorder %s66, %s80
      %p82 = scmp.eq.s32.totalorder %s21, 0
      %p83 = por %p81, %p82
      %s85 = sadd.s32 %s84, 1
      %p88 = scmp.eq.s32.totalorder %s15, 1
      %p89 = scmp.ne.s32.totalorder %s84, %s86
      %p90 = scmp.eq.s32.totalorder %s15, 0
      %p91 = por %p89, %p90
      %p92 = scmp.ne.s32.totalorder %s84, %s86
      %p93 = scmp.eq.s32.totalorder %s20, 1
      %p94 = por %p92, %p93
      %p95 = scmp.ne.s32.totalorder %s86, %s87
      %p96 = scmp.eq.s32.totalorder %s20, 0
      %p97 = por %p95, %p96
      %p98 = scmp.ne.s32.totalorder %s86, %s87
      %p99 = scmp.eq.s32.totalorder %s21, 1
      %p100 = por %p98, %p99
      %p102 = scmp.ne.s32.totalorder %s87, %s101
      %p103 = scmp.eq.s32.totalorder %s21, 0
      %p104 = por %p102, %p103
      %s106 = sadd.s32 %s105, 1
      %p109 = scmp.eq.s32.totalorder %s15, 1
      %p110 = scmp.ne.s32.totalorder %s105, %s107
      %p111 = scmp.eq.s32.totalorder %s15, 0
      %p112 = por %p110, %p111
      %p113 = scmp.ne.s32.totalorder %s105, %s107
      %p114 = scmp.eq.s32.totalorder %s20, 1
      %p115 = por %p113, %p114
      %p116 = scmp.ne.s32.totalorder %s107, %s108
      %p117 = scmp.eq.s32.totalorder %s20, 0
      %p118 = por %p116, %p117
      %p119 = scmp.ne.s32.totalorder %s107, %s108
      %p120 = scmp.eq.s32.totalorder %s21, 1
      %p121 = por %p119, %p120
      %p123 = scmp.ne.s32.totalorder %s108, %s122
      %p124 = scmp.eq.s32.totalorder %s21, 0
      %p125 = por %p123, %p124
      %s127 = sadd.s32 %s126, 1
      %p130 = scmp.eq.s32.totalorder %s15, 1
      %p131 = scmp.ne.s32.totalorder %s126, %s128
      %p132 = scmp.eq.s32.totalorder %s15, 0
      %p133 = por %p131, %p132
      %p134 = scmp.ne.s32.totalorder %s126, %s128
      %p135 = scmp.eq.s32.totalorder %s20, 1
      %p136 = por %p134, %p135
      %p137 = scmp.ne.s32.totalorder %s128, %s129
      %p138 = scmp.eq.s32.totalorder %s20, 0
      %p139 = por %p137, %p138
      %p140 = scmp.ne.s32.totalorder %s128, %s129
      %p141 = scmp.eq.s32.totalorder %s21, 1
      %p142 = por %p140, %p141
      %p144 = scmp.ne.s32.totalorder %s129, %s143
      %p145 = scmp.eq.s32.totalorder %s21, 0
      %p146 = por %p144, %p145
      %s147 = ssub.s32 %s22, %s34
      %s148 = ssub.s32 %s23, %s30
      %s149 = sor.u32 %s147, %s148
      %p150 = scmp.eq.s32.totalorder %s149, 0
      %s152 = sadd.s32 %s151, 1
      %s153 = scalar_select %p150, %s151, %s152
      %p156 = pneg %p150
      %p157 = scmp.eq.s32.totalorder %s15, 1
      %p158 = por %p156, %p157
      %p159 = scmp.ne.s32.totalorder %s151, %s154
      %p160 = scmp.eq.s32.totalorder %s15, 0
      %p161 = por %p159, %p160
      %p162 = scmp.ne.s32.totalorder %s151, %s154
      %p163 = scmp.eq.s32.totalorder %s20, 1
      %p164 = por %p162, %p163
      %p165 = scmp.ne.s32.totalorder %s154, %s155
      %p166 = scmp.eq.s32.totalorder %s20, 0
      %p167 = por %p165, %p166
      %p168 = scmp.ne.s32.totalorder %s154, %s155
      %p169 = scmp.eq.s32.totalorder %s21, 1
      %p170 = por %p168, %p169
      %p172 = scmp.ne.s32.totalorder %s155, %s171
      %p173 = scmp.eq.s32.totalorder %s21, 0
      %p174 = por %p172, %p173
      %p175 = scmp.le.s32.totalorder 1, %s15
      %p176 = scmp.lt.s32.totalorder %s15, 3
      %p177 = pnand %p175, %p176
      %p178 = pneg %p177
      // Predicated region
      $region9: #{tpu_custom_call.1} parent=5 // pred_check
        _
      $region10: #{tpu_custom_call.1} parent=5 // pred_check_branch
        %180 = sbr.rel (%p177) target = $region12
      $region11: #{tpu_custom_call.1} parent=5 // pred_region
        %s181 = ssub.s32 %s15, 1
        // Predicated region
        $region13: #{tpu_custom_call.1} parent=11 // pred_check
          %p182 = pneg %p76
        $region14: #{tpu_custom_call.1} parent=11 // pred_check_branch
          %184 = sbr.rel (%p182) target = $region16
        $region15: #{tpu_custom_call.1} parent=11 // pred_region
          _
        $region16: #{tpu_custom_call.1} parent=11 // pred_fallthru
          _
        // Predicated region
        $region17: #{tpu_custom_call.1} parent=11 // pred_check
          %p185 = pneg %p97
        $region18: #{tpu_custom_call.1} parent=11 // pred_check_branch
          %187 = sbr.rel (%p185) target = $region20
        $region19: #{tpu_custom_call.1} parent=11 // pred_region
          _
        $region20: #{tpu_custom_call.1} parent=11 // pred_fallthru
          _
        // Predicated region
        $region21: #{tpu_custom_call.1} parent=11 // pred_check
          %p188 = pneg %p118
        $region22: #{tpu_custom_call.1} parent=11 // pred_check_branch
          %190 = sbr.rel (%p188) target = $region24
        $region23: #{tpu_custom_call.1} parent=11 // pred_region
          %192 = vsyncadd [#allocation3], 0
          %s193 = sshll.u32 %s3, 4
          %s194 = int_to_ptr.hbm [resolvable:$true] %s193
          %s195 = sshll.u32 [#allocation2], 4
          %s196 = int_to_ptr.vmem [resolvable:$true] %s195
          %201 = dma.hbm_to_vmem [thread:$0]  %s194, 2048, %s196, [#allocation3], 128, 128, 8
        $region24: #{tpu_custom_call.1} parent=11 // pred_fallthru
          _
        // Predicated region
        $region25: #{tpu_custom_call.1} parent=11 // pred_check
          %p202 = pneg %p139
        $region26: #{tpu_custom_call.1} parent=11 // pred_check_branch
          %204 = sbr.rel (%p202) target = $region28
        $region27: #{tpu_custom_call.1} parent=11 // pred_region
          _
        $region28: #{tpu_custom_call.1} parent=11 // pred_fallthru
          _
      $region12: #{tpu_custom_call.1} parent=5 // pred_fallthru
        _
      %p205 = scmp.lt.s32.totalorder %s15, 2
      // Predicated region
      $region29: #{tpu_custom_call.1} parent=5 // pred_check
        %p206 = pneg %p205
      $region30: #{tpu_custom_call.1} parent=5 // pred_check_branch
        %208 = sbr.rel (%p206) target = $region32
      $region31: #{tpu_custom_call.1} parent=5 // pred_region
        // Predicated region
        $region33: #{tpu_custom_call.1} parent=31 // pred_check
          %p209 = pneg %p49
        $region34: #{tpu_custom_call.1} parent=31 // pred_check_branch
          %211 = sbr.rel (%p209) target = $region36
        $region35: #{tpu_custom_call.1} parent=31 // pred_region
          %p212 = scmp.lt.s32.totalorder %s22, 1
          %s213 = scalar_select %p212, %s22, 1
          %p214 = scmp.lt.s32.totalorder %s23, 0
          %s215 = scalar_select %p214, %s23, 0
          %s216 = smul.addr %s213, 16
          %s217 = sadd.s32 %s215, %s216
          %s218 = smul.addr %s217, 8
          %s219 = scalar_lea.vmem %s0, %s218
        $region36: #{tpu_custom_call.1} parent=31 // pred_fallthru
          _
      $region32: #{tpu_custom_call.1} parent=5 // pred_fallthru
        _
      %p220 = scmp.le.s32.totalorder 1, %s15
      %p221 = scmp.lt.s32.totalorder %s15, 3
      %p222 = pnand %p220, %p221
      %p223 = pneg %p222
      // Predicated region
      $region37: #{tpu_custom_call.1} parent=5 // pred_check
        _
      $region38: #{tpu_custom_call.1} parent=5 // pred_check_branch
        %225 = sbr.rel (%p222) target = $region40
      $region39: #{tpu_custom_call.1} parent=5 // pred_region
        %s226 = ssub.s32 %s15, 1
        // Predicated region
        $region41: #{tpu_custom_call.1} parent=39 // pred_check
          %p227 = pneg %p118
        $region42: #{tpu_custom_call.1} parent=39 // pred_check_branch
          %229 = sbr.rel (%p227) target = $region44
        $region43: #{tpu_custom_call.1} parent=39 // pred_region
          %231 = dma.done [#allocation3], 2048
        $region44: #{tpu_custom_call.1} parent=39 // pred_fallthru
          _
        %p232 = scmp.lt.s32.totalorder %s24, 1
        %s233 = scalar_select %p232, %s24, 1
        %p234 = scmp.lt.s32.totalorder %s25, 0
        %s235 = scalar_select %p234, %s25, 0
        %s236 = smul.addr %s233, 16
        %s237 = sadd.s32 %s235, %s236
        %s238 = smul.addr %s237, 8
        %s239 = scalar_lea.vmem %s0, %s238
        %p240 = pneg %p55
        %p241 = pneg %p52
        %p242 = pneg %p76
        %p243 = pneg %p73
        %p244 = pneg %p97
        %p245 = pneg %p94
        %p246 = pneg %p118
        %p247 = pneg %p115
        %p248 = pneg %p139
        %p249 = pneg %p136
        %p250 = pneg %p167
        %p251 = pneg %p164
        %s252 = sand.u32 %s154, 1
        %s253 = scalar_lea.sflag [#allocation4], %s252
        %s254 = sand.u32 %s154, 1
        %s255 = smul.addr %s254, 128
        %s256 = scalar_lea.vmem [#allocation5], %s255
        %p257 = scmp.lt.s32.totalorder %s24, 1
        %s258 = scalar_select %p257, %s24, 1
        %p259 = scmp.lt.s32.totalorder %s25, 0
        %s260 = scalar_select %p259, %s25, 0
        %s261 = smul.addr %s258, 16
        %s262 = sadd.s32 %s260, %s261
        %s263 = smul.addr %s262, 8
        %s264 = scalar_lea.vmem %s0, %s263
        %v265 = vld [vmem:[%s264] sm:$0xff]
        %v266 = vld [vmem:[%s264 + $0x8] sm:$0xff]
        %v267 = vld [vmem:[%s264 + $0x10] sm:$0xff]
        %v268 = vld [vmem:[%s264 + $0x18] sm:$0xff]
        %v269 = vld [vmem:[%s264 + $0x20] sm:$0xff]
        %v270 = vld [vmem:[%s264 + $0x28] sm:$0xff]
        %v271 = vld [vmem:[%s264 + $0x30] sm:$0xff]
        %v272 = vld [vmem:[%s264 + $0x38] sm:$0xff]
        %v273 = vld [vmem:[%s264 + $0x40] sm:$0xff]
        %v274 = vld [vmem:[%s264 + $0x48] sm:$0xff]
        %v275 = vld [vmem:[%s264 + $0x50] sm:$0xff]
        %v276 = vld [vmem:[%s264 + $0x58] sm:$0xff]
        %v277 = vld [vmem:[%s264 + $0x60] sm:$0xff]
        %v278 = vld [vmem:[%s264 + $0x68] sm:$0xff]
        %v279 = vld [vmem:[%s264 + $0x70] sm:$0xff]
        %v280 = vld [vmem:[%s264 + $0x78] sm:$0xff]
        %v281 = vpack.c.bf16 %v266, %v265
        %v282 = vpack.c.bf16 %v268, %v267
        %v283 = vpack.c.bf16 %v270, %v269
        %v284 = vpack.c.bf16 %v272, %v271
        %v285 = vpack.c.bf16 %v274, %v273
        %v286 = vpack.c.bf16 %v276, %v275
        %v287 = vpack.c.bf16 %v278, %v277
        %v288 = vpack.c.bf16 %v280, %v279
        %v289 = vld [vmem:[%s1] sm:$0xf]
        %v290 = vld [vmem:[%s1 + $0x4] sm:$0xf]
        %v291 = vld [vmem:[%s1 + $0x8] sm:$0xf]
        %v292 = vld [vmem:[%s1 + $0xc] sm:$0xf]
        %v293 = vld [vmem:[%s1 + $0x10] sm:$0xf]
        %v294 = vld [vmem:[%s1 + $0x14] sm:$0xf]
        %v295 = vld [vmem:[%s1 + $0x18] sm:$0xf]
        %v296 = vld [vmem:[%s1 + $0x1c] sm:$0xf]
        %v297 = vld [vmem:[%s1 + $0x20] sm:$0xf]
        %v298 = vld [vmem:[%s1 + $0x24] sm:$0xf]
        %v299 = vld [vmem:[%s1 + $0x28] sm:$0xf]
        %v300 = vld [vmem:[%s1 + $0x2c] sm:$0xf]
        %v301 = vld [vmem:[%s1 + $0x30] sm:$0xf]
        %v302 = vld [vmem:[%s1 + $0x34] sm:$0xf]
        %v303 = vld [vmem:[%s1 + $0x38] sm:$0xf]
        %v304 = vld [vmem:[%s1 + $0x3c] sm:$0xf]
        %v305 = vld [vmem:[%s1 + $0x40] sm:$0xf]
        %v306 = vld [vmem:[%s1 + $0x44] sm:$0xf]
        %v307 = vld [vmem:[%s1 + $0x48] sm:$0xf]
        %v308 = vld [vmem:[%s1 + $0x4c] sm:$0xf]
        %v309 = vld [vmem:[%s1 + $0x50] sm:$0xf]
        %v310 = vld [vmem:[%s1 + $0x54] sm:$0xf]
        %v311 = vld [vmem:[%s1 + $0x58] sm:$0xf]
        %v312 = vld [vmem:[%s1 + $0x5c] sm:$0xf]
        %v313 = vld [vmem:[%s1 + $0x60] sm:$0xf]
        %v314 = vld [vmem:[%s1 + $0x64] sm:$0xf]
        %v315 = vld [vmem:[%s1 + $0x68] sm:$0xf]
        %v316 = vld [vmem:[%s1 + $0x6c] sm:$0xf]
        %v317 = vld [vmem:[%s1 + $0x70] sm:$0xf]
        %v318 = vld [vmem:[%s1 + $0x74] sm:$0xf]
        %v319 = vld [vmem:[%s1 + $0x78] sm:$0xf]
        %v320 = vld [vmem:[%s1 + $0x7c] sm:$0xf]
        %v321 = vld [vmem:[%s2] sm:$0xff]
        %v322 = vld [vmem:[%s2 + $0x8] sm:$0xff]
        %v323 = vld [vmem:[%s2 + $0x10] sm:$0xff]
        %v324 = vld [vmem:[%s2 + $0x18] sm:$0xff]
        %v325 = vld [vmem:[%s2 + $0x20] sm:$0xff]
        %v326 = vld [vmem:[%s2 + $0x28] sm:$0xff]
        %v327 = vld [vmem:[%s2 + $0x30] sm:$0xff]
        %v328 = vld [vmem:[%s2 + $0x38] sm:$0xff]
        %v329 = vld [vmem:[%s2 + $0x40] sm:$0xff]
        %v330 = vld [vmem:[%s2 + $0x48] sm:$0xff]
        %v331 = vld [vmem:[%s2 + $0x50] sm:$0xff]
        %v332 = vld [vmem:[%s2 + $0x58] sm:$0xff]
        %v333 = vld [vmem:[%s2 + $0x60] sm:$0xff]
        %v334 = vld [vmem:[%s2 + $0x68] sm:$0xff]
        %v335 = vld [vmem:[%s2 + $0x70] sm:$0xff]
        %v336 = vld [vmem:[%s2 + $0x78] sm:$0xff]
        %v337 = vld [vmem:[%s2 + $0x80] sm:$0xff]
        %v338 = vld [vmem:[%s2 + $0x88] sm:$0xff]
        %v339 = vld [vmem:[%s2 + $0x90] sm:$0xff]
        %v340 = vld [vmem:[%s2 + $0x98] sm:$0xff]
        %v341 = vld [vmem:[%s2 + $0xa0] sm:$0xff]
        %v342 = vld [vmem:[%s2 + $0xa8] sm:$0xff]
        %v343 = vld [vmem:[%s2 + $0xb0] sm:$0xff]
        %v344 = vld [vmem:[%s2 + $0xb8] sm:$0xff]
        %v345 = vld [vmem:[%s2 + $0xc0] sm:$0xff]
        %v346 = vld [vmem:[%s2 + $0xc8] sm:$0xff]
        %v347 = vld [vmem:[%s2 + $0xd0] sm:$0xff]
        %v348 = vld [vmem:[%s2 + $0xd8] sm:$0xff]
        %v349 = vld [vmem:[%s2 + $0xe0] sm:$0xff]
        %v350 = vld [vmem:[%s2 + $0xe8] sm:$0xff]
        %v351 = vld [vmem:[%s2 + $0xf0] sm:$0xff]
        %v352 = vld [vmem:[%s2 + $0xf8] sm:$0xff]
        %354 = vset.pattern.permute.xlu0 0
        %355 = vperm.xlu0 %354, %v321
        %v356 = vpop.permute.xlu0 %355
        %359 = vset.pattern.permute.xlu0 0
        %360 = vperm.xlu0 %359, %v322
        %v361 = vpop.permute.xlu0 %360
        %364 = vset.pattern.permute.xlu0 0
        %365 = vperm.xlu0 %364, %v323
        %v366 = vpop.permute.xlu0 %365
        %369 = vset.pattern.permute.xlu0 0
        %370 = vperm.xlu0 %369, %v324
        %v371 = vpop.permute.xlu0 %370
        %374 = vset.pattern.permute.xlu0 0
        %375 = vperm.xlu0 %374, %v325
        %v376 = vpop.permute.xlu0 %375
        %379 = vset.pattern.permute.xlu0 0
        %380 = vperm.xlu0 %379, %v326
        %v381 = vpop.permute.xlu0 %380
        %384 = vset.pattern.permute.xlu0 0
        %385 = vperm.xlu0 %384, %v327
        %v386 = vpop.permute.xlu0 %385
        %389 = vset.pattern.permute.xlu0 0
        %390 = vperm.xlu0 %389, %v328
        %v391 = vpop.permute.xlu0 %390
        %394 = vset.pattern.permute.xlu0 0
        %395 = vperm.xlu0 %394, %v329
        %v396 = vpop.permute.xlu0 %395
        %399 = vset.pattern.permute.xlu0 0
        %400 = vperm.xlu0 %399, %v330
        %v401 = vpop.permute.xlu0 %400
        %404 = vset.pattern.permute.xlu0 0
        %405 = vperm.xlu0 %404, %v331
        %v406 = vpop.permute.xlu0 %405
        %409 = vset.pattern.permute.xlu0 0
        %410 = vperm.xlu0 %409, %v332
        %v411 = vpop.permute.xlu0 %410
        %414 = vset.pattern.permute.xlu0 0
        %415 = vperm.xlu0 %414, %v333
        %v416 = vpop.permute.xlu0 %415
        %419 = vset.pattern.permute.xlu0 0
        %420 = vperm.xlu0 %419, %v334
        %v421 = vpop.permute.xlu0 %420
        %424 = vset.pattern.permute.xlu0 0
        %425 = vperm.xlu0 %424, %v335
        %v426 = vpop.permute.xlu0 %425
        %429 = vset.pattern.permute.xlu0 0
        %430 = vperm.xlu0 %429, %v336
        %v431 = vpop.permute.xlu0 %430
        %434 = vset.pattern.permute.xlu0 0
        %435 = vperm.xlu0 %434, %v337
        %v436 = vpop.permute.xlu0 %435
        %439 = vset.pattern.permute.xlu0 0
        %440 = vperm.xlu0 %439, %v338
        %v441 = vpop.permute.xlu0 %440
        %444 = vset.pattern.permute.xlu0 0
        %445 = vperm.xlu0 %444, %v339
        %v446 = vpop.permute.xlu0 %445
        %449 = vset.pattern.permute.xlu0 0
        %450 = vperm.xlu0 %449, %v340
        %v451 = vpop.permute.xlu0 %450
        %454 = vset.pattern.permute.xlu0 0
        %455 = vperm.xlu0 %454, %v341
        %v456 = vpop.permute.xlu0 %455
        %459 = vset.pattern.permute.xlu0 0
        %460 = vperm.xlu0 %459, %v342
        %v461 = vpop.permute.xlu0 %460
        %464 = vset.pattern.permute.xlu0 0
        %465 = vperm.xlu0 %464, %v343
        %v466 = vpop.permute.xlu0 %465
        %469 = vset.pattern.permute.xlu0 0
        %470 = vperm.xlu0 %469, %v344
        %v471 = vpop.permute.xlu0 %470
        %474 = vset.pattern.permute.xlu0 0
        %475 = vperm.xlu0 %474, %v345
        %v476 = vpop.permute.xlu0 %475
        %479 = vset.pattern.permute.xlu0 0
        %480 = vperm.xlu0 %479, %v346
        %v481 = vpop.permute.xlu0 %480
        %484 = vset.pattern.permute.xlu0 0
        %485 = vperm.xlu0 %484, %v347
        %v486 = vpop.permute.xlu0 %485
        %489 = vset.pattern.permute.xlu0 0
        %490 = vperm.xlu0 %489, %v348
        %v491 = vpop.permute.xlu0 %490
        %494 = vset.pattern.permute.xlu0 0
        %495 = vperm.xlu0 %494, %v349
        %v496 = vpop.permute.xlu0 %495
        %499 = vset.pattern.permute.xlu0 0
        %500 = vperm.xlu0 %499, %v350
        %v501 = vpop.permute.xlu0 %500
        %504 = vset.pattern.permute.xlu0 0
        %505 = vperm.xlu0 %504, %v351
        %v506 = vpop.permute.xlu0 %505
        %509 = vset.pattern.permute.xlu0 0
        %510 = vperm.xlu0 %509, %v352
        %v511 = vpop.permute.xlu0 %510
        %v545 = vunpack.c.l.b16 %v289
        %v546 = vunpack.c.l.b16 %v290
        %v547 = vunpack.c.l.b16 %v291
        %v548 = vunpack.c.l.b16 %v292
        %v549 = vunpack.c.l.b16 %v293
        %v550 = vunpack.c.l.b16 %v294
        %v551 = vunpack.c.l.b16 %v295
        %v552 = vunpack.c.l.b16 %v296
        %v553 = vunpack.c.l.b16 %v297
        %v554 = vunpack.c.l.b16 %v298
        %v555 = vunpack.c.l.b16 %v299
        %v556 = vunpack.c.l.b16 %v300
        %v557 = vunpack.c.l.b16 %v301
        %v558 = vunpack.c.l.b16 %v302
        %v559 = vunpack.c.l.b16 %v303
        %v560 = vunpack.c.l.b16 %v304
        %v561 = vunpack.c.l.b16 %v305
        %v562 = vunpack.c.l.b16 %v306
        %v563 = vunpack.c.l.b16 %v307
        %v564 = vunpack.c.l.b16 %v308
        %v565 = vunpack.c.l.b16 %v309
        %v566 = vunpack.c.l.b16 %v310
        %v567 = vunpack.c.l.b16 %v311
        %v568 = vunpack.c.l.b16 %v312
        %v569 = vunpack.c.l.b16 %v313
        %v570 = vunpack.c.l.b16 %v314
        %v571 = vunpack.c.l.b16 %v315
        %v572 = vunpack.c.l.b16 %v316
        %v573 = vunpack.c.l.b16 %v317
        %v574 = vunpack.c.l.b16 %v318
        %v575 = vunpack.c.l.b16 %v319
        %v576 = vunpack.c.l.b16 %v320
        %v577 = vpack.c.b16 %v546, %v545
        %v578 = vpack.c.b16 %v548, %v547
        %v579 = vpack.c.b16 %v550, %v549
        %v580 = vpack.c.b16 %v552, %v551
        %v581 = vpack.c.b16 %v554, %v553
        %v582 = vpack.c.b16 %v556, %v555
        %v583 = vpack.c.b16 %v558, %v557
        %v584 = vpack.c.b16 %v560, %v559
        %v585 = vpack.c.b16 %v562, %v561
        %v586 = vpack.c.b16 %v564, %v563
        %v587 = vpack.c.b16 %v566, %v565
        %v588 = vpack.c.b16 %v568, %v567
        %v589 = vpack.c.b16 %v570, %v569
        %v590 = vpack.c.b16 %v572, %v571
        %v591 = vpack.c.b16 %v574, %v573
        %v592 = vpack.c.b16 %v576, %v575
        %609 = vmatpush.bf16.msra.mxu0 %v288
        %610 = vmatpush.bf16.msra.mxu0 %v287
        %611 = vmatpush.bf16.msra.mxu0 %v286
        %612 = vmatpush.bf16.msra.mxu0 %v285
        %613 = vmatpush.bf16.msra.mxu0 %v284
        %614 = vmatpush.bf16.msra.mxu0 %v283
        %615 = vmatpush.bf16.msra.mxu0 %v282
        %616 = vmatpush.bf16.msra.mxu0 %v281
        %617 = vmatmul.bf16.gmra.mxu0 %v577
        %v618 = vpop.f32.mrf.mxu0
        %v619 = vadd.f32 %v356, %v618
        %v620 = vpop.f32.mrf.mxu0
        %v621 = vadd.f32 %v361, %v620
        %622 = vmatmul.bf16.gmra.mxu0 %v578
        %v623 = vpop.f32.mrf.mxu0
        %v624 = vadd.f32 %v366, %v623
        %v625 = vpop.f32.mrf.mxu0
        %v626 = vadd.f32 %v371, %v625
        %627 = vmatmul.bf16.gmra.mxu0 %v579
        %v628 = vpop.f32.mrf.mxu0
        %v629 = vadd.f32 %v376, %v628
        %v630 = vpop.f32.mrf.mxu0
        %v631 = vadd.f32 %v381, %v630
        %632 = vmatmul.bf16.gmra.mxu0 %v580
        %v633 = vpop.f32.mrf.mxu0
        %v634 = vadd.f32 %v386, %v633
        %v635 = vpop.f32.mrf.mxu0
        %v636 = vadd.f32 %v391, %v635
        %637 = vmatmul.bf16.gmra.mxu0 %v581
        %v638 = vpop.f32.mrf.mxu0
        %v639 = vadd.f32 %v396, %v638
        %v640 = vpop.f32.mrf.mxu0
        %v641 = vadd.f32 %v401, %v640
        %642 = vmatmul.bf16.gmra.mxu0 %v582
        %v643 = vpop.f32.mrf.mxu0
        %v644 = vadd.f32 %v406, %v643
        %v645 = vpop.f32.mrf.mxu0
        %v646 = vadd.f32 %v411, %v645
        %647 = vmatmul.bf16.gmra.mxu0 %v583
        %v648 = vpop.f32.mrf.mxu0
        %v649 = vadd.f32 %v416, %v648
        %v650 = vpop.f32.mrf.mxu0
        %v651 = vadd.f32 %v421, %v650
        %652 = vmatmul.bf16.gmra.mxu0 %v584
        %v653 = vpop.f32.mrf.mxu0
        %v654 = vadd.f32 %v426, %v653
        %v655 = vpop.f32.mrf.mxu0
        %v656 = vadd.f32 %v431, %v655
        %657 = vmatmul.bf16.gmra.mxu0 %v585
        %v658 = vpop.f32.mrf.mxu0
        %v659 = vadd.f32 %v436, %v658
        %v660 = vpop.f32.mrf.mxu0
        %v661 = vadd.f32 %v441, %v660
        %662 = vmatmul.bf16.gmra.mxu0 %v586
        %v663 = vpop.f32.mrf.mxu0
        %v664 = vadd.f32 %v446, %v663
        %v665 = vpop.f32.mrf.mxu0
        %v666 = vadd.f32 %v451, %v665
        %667 = vmatmul.bf16.gmra.mxu0 %v587
        %v668 = vpop.f32.mrf.mxu0
        %v669 = vadd.f32 %v456, %v668
        %v670 = vpop.f32.mrf.mxu0
        %v671 = vadd.f32 %v461, %v670
        %672 = vmatmul.bf16.gmra.mxu0 %v588
        %v673 = vpop.f32.mrf.mxu0
        %v674 = vadd.f32 %v466, %v673
        %v675 = vpop.f32.mrf.mxu0
        %v676 = vadd.f32 %v471, %v675
        %677 = vmatmul.bf16.gmra.mxu0 %v589
        %v678 = vpop.f32.mrf.mxu0
        %v679 = vadd.f32 %v476, %v678
        %v680 = vpop.f32.mrf.mxu0
        %v681 = vadd.f32 %v481, %v680
        %682 = vmatmul.bf16.gmra.mxu0 %v590
        %v683 = vpop.f32.mrf.mxu0
        %v684 = vadd.f32 %v486, %v683
        %v685 = vpop.f32.mrf.mxu0
        %v686 = vadd.f32 %v491, %v685
        %687 = vmatmul.bf16.gmra.mxu0 %v591
        %v688 = vpop.f32.mrf.mxu0
        %v689 = vadd.f32 %v496, %v688
        %v690 = vpop.f32.mrf.mxu0
        %v691 = vadd.f32 %v501, %v690
        %692 = vmatmul.bf16.gmra.mxu0 %v592
        %v693 = vpop.f32.mrf.mxu0
        %v694 = vadd.f32 %v506, %v693
        %v695 = vpop.f32.mrf.mxu0
        %v696 = vadd.f32 %v511, %v695
        %697 = vdwg.mxu0
        %v698 = vxor.u32 %v619, 2147483648
        %v699 = vxor.u32 %v621, 2147483648
        %v700 = vxor.u32 %v624, 2147483648
        %v701 = vxor.u32 %v626, 2147483648
        %v702 = vxor.u32 %v629, 2147483648
        %v703 = vxor.u32 %v631, 2147483648
        %v704 = vxor.u32 %v634, 2147483648
        %v705 = vxor.u32 %v636, 2147483648
        %v706 = vxor.u32 %v639, 2147483648
        %v707 = vxor.u32 %v641, 2147483648
        %v708 = vxor.u32 %v644, 2147483648
        %v709 = vxor.u32 %v646, 2147483648
        %v710 = vxor.u32 %v649, 2147483648
        %v711 = vxor.u32 %v651, 2147483648
        %v712 = vxor.u32 %v654, 2147483648
        %v713 = vxor.u32 %v656, 2147483648
        %v714 = vxor.u32 %v659, 2147483648
        %v715 = vxor.u32 %v661, 2147483648
        %v716 = vxor.u32 %v664, 2147483648
        %v717 = vxor.u32 %v666, 2147483648
        %v718 = vxor.u32 %v669, 2147483648
        %v719 = vxor.u32 %v671, 2147483648
        %v720 = vxor.u32 %v674, 2147483648
        %v721 = vxor.u32 %v676, 2147483648
        %v722 = vxor.u32 %v679, 2147483648
        %v723 = vxor.u32 %v681, 2147483648
        %v724 = vxor.u32 %v684, 2147483648
        %v725 = vxor.u32 %v686, 2147483648
        %v726 = vxor.u32 %v689, 2147483648
        %v727 = vxor.u32 %v691, 2147483648
        %v728 = vxor.u32 %v694, 2147483648
        %v729 = vxor.u32 %v696, 2147483648
        %v730 = vmul.f32 %v698, 1.442695
        %v731 = vpow.pop %v730
        %v732 = vmul.f32 %v699, 1.442695
        %v733 = vpow.pop %v732
        %v734 = vmul.f32 %v700, 1.442695
        %v735 = vpow.pop %v734
        %v736 = vmul.f32 %v701, 1.442695
        %v737 = vpow.pop %v736
        %v738 = vmul.f32 %v702, 1.442695
        %v739 = vpow.pop %v738
        %v740 = vmul.f32 %v703, 1.442695
        %v741 = vpow.pop %v740
        %v742 = vmul.f32 %v704, 1.442695
        %v743 = vpow.pop %v742
        %v744 = vmul.f32 %v705, 1.442695
        %v745 = vpow.pop %v744
        %v746 = vmul.f32 %v706, 1.442695
        %v747 = vpow.pop %v746
        %v748 = vmul.f32 %v707, 1.442695
        %v749 = vpow.pop %v748
        %v750 = vmul.f32 %v708, 1.442695
        %v751 = vpow.pop %v750
        %v752 = vmul.f32 %v709, 1.442695
        %v753 = vpow.pop %v752
        %v754 = vmul.f32 %v710, 1.442695
        %v755 = vpow.pop %v754
        %v756 = vmul.f32 %v711, 1.442695
        %v757 = vpow.pop %v756
        %v758 = vmul.f32 %v712, 1.442695
        %v759 = vpow.pop %v758
        %v760 = vmul.f32 %v713, 1.442695
        %v761 = vpow.pop %v760
        %v762 = vmul.f32 %v714, 1.442695
        %v763 = vpow.pop %v762
        %v764 = vmul.f32 %v715, 1.442695
        %v765 = vpow.pop %v764
        %v766 = vmul.f32 %v716, 1.442695
        %v767 = vpow.pop %v766
        %v768 = vmul.f32 %v717, 1.442695
        %v769 = vpow.pop %v768
        %v770 = vmul.f32 %v718, 1.442695
        %v771 = vpow.pop %v770
        %v772 = vmul.f32 %v719, 1.442695
        %v773 = vpow.pop %v772
        %v774 = vmul.f32 %v720, 1.442695
        %v775 = vpow.pop %v774
        %v776 = vmul.f32 %v721, 1.442695
        %v777 = vpow.pop %v776
        %v778 = vmul.f32 %v722, 1.442695
        %v779 = vpow.pop %v778
        %v780 = vmul.f32 %v723, 1.442695
        %v781 = vpow.pop %v780
        %v782 = vmul.f32 %v724, 1.442695
        %v783 = vpow.pop %v782
        %v784 = vmul.f32 %v725, 1.442695
        %v785 = vpow.pop %v784
        %v786 = vmul.f32 %v726, 1.442695
        %v787 = vpow.pop %v786
        %v788 = vmul.f32 %v727, 1.442695
        %v789 = vpow.pop %v788
        %v790 = vmul.f32 %v728, 1.442695
        %v791 = vpow.pop %v790
        %v792 = vmul.f32 %v729, 1.442695
        %v793 = vpow.pop %v792
        %v794 = vadd.f32 %v731, 1.0
        %v795 = vadd.f32 %v733, 1.0
        %v796 = vadd.f32 %v735, 1.0
        %v797 = vadd.f32 %v737, 1.0
        %v798 = vadd.f32 %v739, 1.0
        %v799 = vadd.f32 %v741, 1.0
        %v800 = vadd.f32 %v743, 1.0
        %v801 = vadd.f32 %v745, 1.0
        %v802 = vadd.f32 %v747, 1.0
        %v803 = vadd.f32 %v749, 1.0
        %v804 = vadd.f32 %v751, 1.0
        %v805 = vadd.f32 %v753, 1.0
        %v806 = vadd.f32 %v755, 1.0
        %v807 = vadd.f32 %v757, 1.0
        %v808 = vadd.f32 %v759, 1.0
        %v809 = vadd.f32 %v761, 1.0
        %v810 = vadd.f32 %v763, 1.0
        %v811 = vadd.f32 %v765, 1.0
        %v812 = vadd.f32 %v767, 1.0
        %v813 = vadd.f32 %v769, 1.0
        %v814 = vadd.f32 %v771, 1.0
        %v815 = vadd.f32 %v773, 1.0
        %v816 = vadd.f32 %v775, 1.0
        %v817 = vadd.f32 %v777, 1.0
        %v818 = vadd.f32 %v779, 1.0
        %v819 = vadd.f32 %v781, 1.0
        %v820 = vadd.f32 %v783, 1.0
        %v821 = vadd.f32 %v785, 1.0
        %v822 = vadd.f32 %v787, 1.0
        %v823 = vadd.f32 %v789, 1.0
        %v824 = vadd.f32 %v791, 1.0
        %v825 = vadd.f32 %v793, 1.0
        %v826 = vrcp.pop %v794
        %v827 = vmul.f32 %v794, %v826
        %v828 = vsub.f32 1.0, %v827
        %v829 = vmul.f32 %v826, %v828
        %v830 = vadd.f32 %v826, %v829
        %vm831 = vweird.f32 %v794
        %vm832 = vweird.f32 %v826
        %vm833 = vmor %vm831, %vm832
        %v834 = vsel %vm833, %v826, %v830
        %v835 = vand.u32 2147483647, %v794
        %vm836 = vcmp.eq.f32.partialorder %v835, 8.507059e+37
        %v837 = vand.u32 %v794, 2147483648
        %v838 = vor.u32 1.1754944e-38, %v837
        %v839 = vsel %vm836, %v838, %v834
        %v840 = vmul.f32 1.0, %v839
        %v841 = vrcp.pop %v795
        %v842 = vmul.f32 %v795, %v841
        %v843 = vsub.f32 1.0, %v842
        %v844 = vmul.f32 %v841, %v843
        %v845 = vadd.f32 %v841, %v844
        %vm846 = vweird.f32 %v795
        %vm847 = vweird.f32 %v841
        %vm848 = vmor %vm846, %vm847
        %v849 = vsel %vm848, %v841, %v845
        %v850 = vand.u32 2147483647, %v795
        %vm851 = vcmp.eq.f32.partialorder %v850, 8.507059e+37
        %v852 = vand.u32 %v795, 2147483648
        %v853 = vor.u32 1.1754944e-38, %v852
        %v854 = vsel %vm851, %v853, %v849
        %v855 = vmul.f32 1.0, %v854
        %v856 = vrcp.pop %v796
        %v857 = vmul.f32 %v796, %v856
        %v858 = vsub.f32 1.0, %v857
        %v859 = vmul.f32 %v856, %v858
        %v860 = vadd.f32 %v856, %v859
        %vm861 = vweird.f32 %v796
        %vm862 = vweird.f32 %v856
        %vm863 = vmor %vm861, %vm862
        %v864 = vsel %vm863, %v856, %v860
        %v865 = vand.u32 2147483647, %v796
        %vm866 = vcmp.eq.f32.partialorder %v865, 8.507059e+37
        %v867 = vand.u32 %v796, 2147483648
        %v868 = vor.u32 1.1754944e-38, %v867
        %v869 = vsel %vm866, %v868, %v864
        %v870 = vmul.f32 1.0, %v869
        %v871 = vrcp.pop %v797
        %v872 = vmul.f32 %v797, %v871
        %v873 = vsub.f32 1.0, %v872
        %v874 = vmul.f32 %v871, %v873
        %v875 = vadd.f32 %v871, %v874
        %vm876 = vweird.f32 %v797
        %vm877 = vweird.f32 %v871
        %vm878 = vmor %vm876, %vm877
        %v879 = vsel %vm878, %v871, %v875
        %v880 = vand.u32 2147483647, %v797
        %vm881 = vcmp.eq.f32.partialorder %v880, 8.507059e+37
        %v882 = vand.u32 %v797, 2147483648
        %v883 = vor.u32 1.1754944e-38, %v882
        %v884 = vsel %vm881, %v883, %v879
        %v885 = vmul.f32 1.0, %v884
        %v886 = vrcp.pop %v798
        %v887 = vmul.f32 %v798, %v886
        %v888 = vsub.f32 1.0, %v887
        %v889 = vmul.f32 %v886, %v888
        %v890 = vadd.f32 %v886, %v889
        %vm891 = vweird.f32 %v798
        %vm892 = vweird.f32 %v886
        %vm893 = vmor %vm891, %vm892
        %v894 = vsel %vm893, %v886, %v890
        %v895 = vand.u32 2147483647, %v798
        %vm896 = vcmp.eq.f32.partialorder %v895, 8.507059e+37
        %v897 = vand.u32 %v798, 2147483648
        %v898 = vor.u32 1.1754944e-38, %v897
        %v899 = vsel %vm896, %v898, %v894
        %v900 = vmul.f32 1.0, %v899
        %v901 = vrcp.pop %v799
        %v902 = vmul.f32 %v799, %v901
        %v903 = vsub.f32 1.0, %v902
        %v904 = vmul.f32 %v901, %v903
        %v905 = vadd.f32 %v901, %v904
        %vm906 = vweird.f32 %v799
        %vm907 = vweird.f32 %v901
        %vm908 = vmor %vm906, %vm907
        %v909 = vsel %vm908, %v901, %v905
        %v910 = vand.u32 2147483647, %v799
        %vm911 = vcmp.eq.f32.partialorder %v910, 8.507059e+37
        %v912 = vand.u32 %v799, 2147483648
        %v913 = vor.u32 1.1754944e-38, %v912
        %v914 = vsel %vm911, %v913, %v909
        %v915 = vmul.f32 1.0, %v914
        %v916 = vrcp.pop %v800
        %v917 = vmul.f32 %v800, %v916
        %v918 = vsub.f32 1.0, %v917
        %v919 = vmul.f32 %v916, %v918
        %v920 = vadd.f32 %v916, %v919
        %vm921 = vweird.f32 %v800
        %vm922 = vweird.f32 %v916
        %vm923 = vmor %vm921, %vm922
        %v924 = vsel %vm923, %v916, %v920
        %v925 = vand.u32 2147483647, %v800
        %vm926 = vcmp.eq.f32.partialorder %v925, 8.507059e+37
        %v927 = vand.u32 %v800, 2147483648
        %v928 = vor.u32 1.1754944e-38, %v927
        %v929 = vsel %vm926, %v928, %v924
        %v930 = vmul.f32 1.0, %v929
        %v931 = vrcp.pop %v801
        %v932 = vmul.f32 %v801, %v931
        %v933 = vsub.f32 1.0, %v932
        %v934 = vmul.f32 %v931, %v933
        %v935 = vadd.f32 %v931, %v934
        %vm936 = vweird.f32 %v801
        %vm937 = vweird.f32 %v931
        %vm938 = vmor %vm936, %vm937
        %v939 = vsel %vm938, %v931, %v935
        %v940 = vand.u32 2147483647, %v801
        %vm941 = vcmp.eq.f32.partialorder %v940, 8.507059e+37
        %v942 = vand.u32 %v801, 2147483648
        %v943 = vor.u32 1.1754944e-38, %v942
        %v944 = vsel %vm941, %v943, %v939
        %v945 = vmul.f32 1.0, %v944
        %v946 = vrcp.pop %v802
        %v947 = vmul.f32 %v802, %v946
        %v948 = vsub.f32 1.0, %v947
        %v949 = vmul.f32 %v946, %v948
        %v950 = vadd.f32 %v946, %v949
        %vm951 = vweird.f32 %v802
        %vm952 = vweird.f32 %v946
        %vm953 = vmor %vm951, %vm952
        %v954 = vsel %vm953, %v946, %v950
        %v955 = vand.u32 2147483647, %v802
        %vm956 = vcmp.eq.f32.partialorder %v955, 8.507059e+37
        %v957 = vand.u32 %v802, 2147483648
        %v958 = vor.u32 1.1754944e-38, %v957
        %v959 = vsel %vm956, %v958, %v954
        %v960 = vmul.f32 1.0, %v959
        %v961 = vrcp.pop %v803
        %v962 = vmul.f32 %v803, %v961
        %v963 = vsub.f32 1.0, %v962
        %v964 = vmul.f32 %v961, %v963
        %v965 = vadd.f32 %v961, %v964
        %vm966 = vweird.f32 %v803
        %vm967 = vweird.f32 %v961
        %vm968 = vmor %vm966, %vm967
        %v969 = vsel %vm968, %v961, %v965
        %v970 = vand.u32 2147483647, %v803
        %vm971 = vcmp.eq.f32.partialorder %v970, 8.507059e+37
        %v972 = vand.u32 %v803, 2147483648
        %v973 = vor.u32 1.1754944e-38, %v972
        %v974 = vsel %vm971, %v973, %v969
        %v975 = vmul.f32 1.0, %v974
        %v976 = vrcp.pop %v804
        %v977 = vmul.f32 %v804, %v976
        %v978 = vsub.f32 1.0, %v977
        %v979 = vmul.f32 %v976, %v978
        %v980 = vadd.f32 %v976, %v979
        %vm981 = vweird.f32 %v804
        %vm982 = vweird.f32 %v976
        %vm983 = vmor %vm981, %vm982
        %v984 = vsel %vm983, %v976, %v980
        %v985 = vand.u32 2147483647, %v804
        %vm986 = vcmp.eq.f32.partialorder %v985, 8.507059e+37
        %v987 = vand.u32 %v804, 2147483648
        %v988 = vor.u32 1.1754944e-38, %v987
        %v989 = vsel %vm986, %v988, %v984
        %v990 = vmul.f32 1.0, %v989
        %v991 = vrcp.pop %v805
        %v992 = vmul.f32 %v805, %v991
        %v993 = vsub.f32 1.0, %v992
        %v994 = vmul.f32 %v991, %v993
        %v995 = vadd.f32 %v991, %v994
        %vm996 = vweird.f32 %v805
        %vm997 = vweird.f32 %v991
        %vm998 = vmor %vm996, %vm997
        %v999 = vsel %vm998, %v991, %v995
        %v1000 = vand.u32 2147483647, %v805
        %vm1001 = vcmp.eq.f32.partialorder %v1000, 8.507059e+37
        %v1002 = vand.u32 %v805, 2147483648
        %v1003 = vor.u32 1.1754944e-38, %v1002
        %v1004 = vsel %vm1001, %v1003, %v999
        %v1005 = vmul.f32 1.0, %v1004
        %v1006 = vrcp.pop %v806
        %v1007 = vmul.f32 %v806, %v1006
        %v1008 = vsub.f32 1.0, %v1007
        %v1009 = vmul.f32 %v1006, %v1008
        %v1010 = vadd.f32 %v1006, %v1009
        %vm1011 = vweird.f32 %v806
        %vm1012 = vweird.f32 %v1006
        %vm1013 = vmor %vm1011, %vm1012
        %v1014 = vsel %vm1013, %v1006, %v1010
        %v1015 = vand.u32 2147483647, %v806
        %vm1016 = vcmp.eq.f32.partialorder %v1015, 8.507059e+37
        %v1017 = vand.u32 %v806, 2147483648
        %v1018 = vor.u32 1.1754944e-38, %v1017
        %v1019 = vsel %vm1016, %v1018, %v1014
        %v1020 = vmul.f32 1.0, %v1019
        %v1021 = vrcp.pop %v807
        %v1022 = vmul.f32 %v807, %v1021
        %v1023 = vsub.f32 1.0, %v1022
        %v1024 = vmul.f32 %v1021, %v1023
        %v1025 = vadd.f32 %v1021, %v1024
        %vm1026 = vweird.f32 %v807
        %vm1027 = vweird.f32 %v1021
        %vm1028 = vmor %vm1026, %vm1027
        %v1029 = vsel %vm1028, %v1021, %v1025
        %v1030 = vand.u32 2147483647, %v807
        %vm1031 = vcmp.eq.f32.partialorder %v1030, 8.507059e+37
        %v1032 = vand.u32 %v807, 2147483648
        %v1033 = vor.u32 1.1754944e-38, %v1032
        %v1034 = vsel %vm1031, %v1033, %v1029
        %v1035 = vmul.f32 1.0, %v1034
        %v1036 = vrcp.pop %v808
        %v1037 = vmul.f32 %v808, %v1036
        %v1038 = vsub.f32 1.0, %v1037
        %v1039 = vmul.f32 %v1036, %v1038
        %v1040 = vadd.f32 %v1036, %v1039
        %vm1041 = vweird.f32 %v808
        %vm1042 = vweird.f32 %v1036
        %vm1043 = vmor %vm1041, %vm1042
        %v1044 = vsel %vm1043, %v1036, %v1040
        %v1045 = vand.u32 2147483647, %v808
        %vm1046 = vcmp.eq.f32.partialorder %v1045, 8.507059e+37
        %v1047 = vand.u32 %v808, 2147483648
        %v1048 = vor.u32 1.1754944e-38, %v1047
        %v1049 = vsel %vm1046, %v1048, %v1044
        %v1050 = vmul.f32 1.0, %v1049
        %v1051 = vrcp.pop %v809
        %v1052 = vmul.f32 %v809, %v1051
        %v1053 = vsub.f32 1.0, %v1052
        %v1054 = vmul.f32 %v1051, %v1053
        %v1055 = vadd.f32 %v1051, %v1054
        %vm1056 = vweird.f32 %v809
        %vm1057 = vweird.f32 %v1051
        %vm1058 = vmor %vm1056, %vm1057
        %v1059 = vsel %vm1058, %v1051, %v1055
        %v1060 = vand.u32 2147483647, %v809
        %vm1061 = vcmp.eq.f32.partialorder %v1060, 8.507059e+37
        %v1062 = vand.u32 %v809, 2147483648
        %v1063 = vor.u32 1.1754944e-38, %v1062
        %v1064 = vsel %vm1061, %v1063, %v1059
        %v1065 = vmul.f32 1.0, %v1064
        %v1066 = vrcp.pop %v810
        %v1067 = vmul.f32 %v810, %v1066
        %v1068 = vsub.f32 1.0, %v1067
        %v1069 = vmul.f32 %v1066, %v1068
        %v1070 = vadd.f32 %v1066, %v1069
        %vm1071 = vweird.f32 %v810
        %vm1072 = vweird.f32 %v1066
        %vm1073 = vmor %vm1071, %vm1072
        %v1074 = vsel %vm1073, %v1066, %v1070
        %v1075 = vand.u32 2147483647, %v810
        %vm1076 = vcmp.eq.f32.partialorder %v1075, 8.507059e+37
        %v1077 = vand.u32 %v810, 2147483648
        %v1078 = vor.u32 1.1754944e-38, %v1077
        %v1079 = vsel %vm1076, %v1078, %v1074
        %v1080 = vmul.f32 1.0, %v1079
        %v1081 = vrcp.pop %v811
        %v1082 = vmul.f32 %v811, %v1081
        %v1083 = vsub.f32 1.0, %v1082
        %v1084 = vmul.f32 %v1081, %v1083
        %v1085 = vadd.f32 %v1081, %v1084
        %vm1086 = vweird.f32 %v811
        %vm1087 = vweird.f32 %v1081
        %vm1088 = vmor %vm1086, %vm1087
        %v1089 = vsel %vm1088, %v1081, %v1085
        %v1090 = vand.u32 2147483647, %v811
        %vm1091 = vcmp.eq.f32.partialorder %v1090, 8.507059e+37
        %v1092 = vand.u32 %v811, 2147483648
        %v1093 = vor.u32 1.1754944e-38, %v1092
        %v1094 = vsel %vm1091, %v1093, %v1089
        %v1095 = vmul.f32 1.0, %v1094
        %v1096 = vrcp.pop %v812
        %v1097 = vmul.f32 %v812, %v1096
        %v1098 = vsub.f32 1.0, %v1097
        %v1099 = vmul.f32 %v1096, %v1098
        %v1100 = vadd.f32 %v1096, %v1099
        %vm1101 = vweird.f32 %v812
        %vm1102 = vweird.f32 %v1096
        %vm1103 = vmor %vm1101, %vm1102
        %v1104 = vsel %vm1103, %v1096, %v1100
        %v1105 = vand.u32 2147483647, %v812
        %vm1106 = vcmp.eq.f32.partialorder %v1105, 8.507059e+37
        %v1107 = vand.u32 %v812, 2147483648
        %v1108 = vor.u32 1.1754944e-38, %v1107
        %v1109 = vsel %vm1106, %v1108, %v1104
        %v1110 = vmul.f32 1.0, %v1109
        %v1111 = vrcp.pop %v813
        %v1112 = vmul.f32 %v813, %v1111
        %v1113 = vsub.f32 1.0, %v1112
        %v1114 = vmul.f32 %v1111, %v1113
        %v1115 = vadd.f32 %v1111, %v1114
        %vm1116 = vweird.f32 %v813
        %vm1117 = vweird.f32 %v1111
        %vm1118 = vmor %vm1116, %vm1117
        %v1119 = vsel %vm1118, %v1111, %v1115
        %v1120 = vand.u32 2147483647, %v813
        %vm1121 = vcmp.eq.f32.partialorder %v1120, 8.507059e+37
        %v1122 = vand.u32 %v813, 2147483648
        %v1123 = vor.u32 1.1754944e-38, %v1122
        %v1124 = vsel %vm1121, %v1123, %v1119
        %v1125 = vmul.f32 1.0, %v1124
        %v1126 = vrcp.pop %v814
        %v1127 = vmul.f32 %v814, %v1126
        %v1128 = vsub.f32 1.0, %v1127
        %v1129 = vmul.f32 %v1126, %v1128
        %v1130 = vadd.f32 %v1126, %v1129
        %vm1131 = vweird.f32 %v814
        %vm1132 = vweird.f32 %v1126
        %vm1133 = vmor %vm1131, %vm1132
        %v1134 = vsel %vm1133, %v1126, %v1130
        %v1135 = vand.u32 2147483647, %v814
        %vm1136 = vcmp.eq.f32.partialorder %v1135, 8.507059e+37
        %v1137 = vand.u32 %v814, 2147483648
        %v1138 = vor.u32 1.1754944e-38, %v1137
        %v1139 = vsel %vm1136, %v1138, %v1134
        %v1140 = vmul.f32 1.0, %v1139
        %v1141 = vrcp.pop %v815
        %v1142 = vmul.f32 %v815, %v1141
        %v1143 = vsub.f32 1.0, %v1142
        %v1144 = vmul.f32 %v1141, %v1143
        %v1145 = vadd.f32 %v1141, %v1144
        %vm1146 = vweird.f32 %v815
        %vm1147 = vweird.f32 %v1141
        %vm1148 = vmor %vm1146, %vm1147
        %v1149 = vsel %vm1148, %v1141, %v1145
        %v1150 = vand.u32 2147483647, %v815
        %vm1151 = vcmp.eq.f32.partialorder %v1150, 8.507059e+37
        %v1152 = vand.u32 %v815, 2147483648
        %v1153 = vor.u32 1.1754944e-38, %v1152
        %v1154 = vsel %vm1151, %v1153, %v1149
        %v1155 = vmul.f32 1.0, %v1154
        %v1156 = vrcp.pop %v816
        %v1157 = vmul.f32 %v816, %v1156
        %v1158 = vsub.f32 1.0, %v1157
        %v1159 = vmul.f32 %v1156, %v1158
        %v1160 = vadd.f32 %v1156, %v1159
        %vm1161 = vweird.f32 %v816
        %vm1162 = vweird.f32 %v1156
        %vm1163 = vmor %vm1161, %vm1162
        %v1164 = vsel %vm1163, %v1156, %v1160
        %v1165 = vand.u32 2147483647, %v816
        %vm1166 = vcmp.eq.f32.partialorder %v1165, 8.507059e+37
        %v1167 = vand.u32 %v816, 2147483648
        %v1168 = vor.u32 1.1754944e-38, %v1167
        %v1169 = vsel %vm1166, %v1168, %v1164
        %v1170 = vmul.f32 1.0, %v1169
        %v1171 = vrcp.pop %v817
        %v1172 = vmul.f32 %v817, %v1171
        %v1173 = vsub.f32 1.0, %v1172
        %v1174 = vmul.f32 %v1171, %v1173
        %v1175 = vadd.f32 %v1171, %v1174
        %vm1176 = vweird.f32 %v817
        %vm1177 = vweird.f32 %v1171
        %vm1178 = vmor %vm1176, %vm1177
        %v1179 = vsel %vm1178, %v1171, %v1175
        %v1180 = vand.u32 2147483647, %v817
        %vm1181 = vcmp.eq.f32.partialorder %v1180, 8.507059e+37
        %v1182 = vand.u32 %v817, 2147483648
        %v1183 = vor.u32 1.1754944e-38, %v1182
        %v1184 = vsel %vm1181, %v1183, %v1179
        %v1185 = vmul.f32 1.0, %v1184
        %v1186 = vrcp.pop %v818
        %v1187 = vmul.f32 %v818, %v1186
        %v1188 = vsub.f32 1.0, %v1187
        %v1189 = vmul.f32 %v1186, %v1188
        %v1190 = vadd.f32 %v1186, %v1189
        %vm1191 = vweird.f32 %v818
        %vm1192 = vweird.f32 %v1186
        %vm1193 = vmor %vm1191, %vm1192
        %v1194 = vsel %vm1193, %v1186, %v1190
        %v1195 = vand.u32 2147483647, %v818
        %vm1196 = vcmp.eq.f32.partialorder %v1195, 8.507059e+37
        %v1197 = vand.u32 %v818, 2147483648
        %v1198 = vor.u32 1.1754944e-38, %v1197
        %v1199 = vsel %vm1196, %v1198, %v1194
        %v1200 = vmul.f32 1.0, %v1199
        %v1201 = vrcp.pop %v819
        %v1202 = vmul.f32 %v819, %v1201
        %v1203 = vsub.f32 1.0, %v1202
        %v1204 = vmul.f32 %v1201, %v1203
        %v1205 = vadd.f32 %v1201, %v1204
        %vm1206 = vweird.f32 %v819
        %vm1207 = vweird.f32 %v1201
        %vm1208 = vmor %vm1206, %vm1207
        %v1209 = vsel %vm1208, %v1201, %v1205
        %v1210 = vand.u32 2147483647, %v819
        %vm1211 = vcmp.eq.f32.partialorder %v1210, 8.507059e+37
        %v1212 = vand.u32 %v819, 2147483648
        %v1213 = vor.u32 1.1754944e-38, %v1212
        %v1214 = vsel %vm1211, %v1213, %v1209
        %v1215 = vmul.f32 1.0, %v1214
        %v1216 = vrcp.pop %v820
        %v1217 = vmul.f32 %v820, %v1216
        %v1218 = vsub.f32 1.0, %v1217
        %v1219 = vmul.f32 %v1216, %v1218
        %v1220 = vadd.f32 %v1216, %v1219
        %vm1221 = vweird.f32 %v820
        %vm1222 = vweird.f32 %v1216
        %vm1223 = vmor %vm1221, %vm1222
        %v1224 = vsel %vm1223, %v1216, %v1220
        %v1225 = vand.u32 2147483647, %v820
        %vm1226 = vcmp.eq.f32.partialorder %v1225, 8.507059e+37
        %v1227 = vand.u32 %v820, 2147483648
        %v1228 = vor.u32 1.1754944e-38, %v1227
        %v1229 = vsel %vm1226, %v1228, %v1224
        %v1230 = vmul.f32 1.0, %v1229
        %v1231 = vrcp.pop %v821
        %v1232 = vmul.f32 %v821, %v1231
        %v1233 = vsub.f32 1.0, %v1232
        %v1234 = vmul.f32 %v1231, %v1233
        %v1235 = vadd.f32 %v1231, %v1234
        %vm1236 = vweird.f32 %v821
        %vm1237 = vweird.f32 %v1231
        %vm1238 = vmor %vm1236, %vm1237
        %v1239 = vsel %vm1238, %v1231, %v1235
        %v1240 = vand.u32 2147483647, %v821
        %vm1241 = vcmp.eq.f32.partialorder %v1240, 8.507059e+37
        %v1242 = vand.u32 %v821, 2147483648
        %v1243 = vor.u32 1.1754944e-38, %v1242
        %v1244 = vsel %vm1241, %v1243, %v1239
        %v1245 = vmul.f32 1.0, %v1244
        %v1246 = vrcp.pop %v822
        %v1247 = vmul.f32 %v822, %v1246
        %v1248 = vsub.f32 1.0, %v1247
        %v1249 = vmul.f32 %v1246, %v1248
        %v1250 = vadd.f32 %v1246, %v1249
        %vm1251 = vweird.f32 %v822
        %vm1252 = vweird.f32 %v1246
        %vm1253 = vmor %vm1251, %vm1252
        %v1254 = vsel %vm1253, %v1246, %v1250
        %v1255 = vand.u32 2147483647, %v822
        %vm1256 = vcmp.eq.f32.partialorder %v1255, 8.507059e+37
        %v1257 = vand.u32 %v822, 2147483648
        %v1258 = vor.u32 1.1754944e-38, %v1257
        %v1259 = vsel %vm1256, %v1258, %v1254
        %v1260 = vmul.f32 1.0, %v1259
        %v1261 = vrcp.pop %v823
        %v1262 = vmul.f32 %v823, %v1261
        %v1263 = vsub.f32 1.0, %v1262
        %v1264 = vmul.f32 %v1261, %v1263
        %v1265 = vadd.f32 %v1261, %v1264
        %vm1266 = vweird.f32 %v823
        %vm1267 = vweird.f32 %v1261
        %vm1268 = vmor %vm1266, %vm1267
        %v1269 = vsel %vm1268, %v1261, %v1265
        %v1270 = vand.u32 2147483647, %v823
        %vm1271 = vcmp.eq.f32.partialorder %v1270, 8.507059e+37
        %v1272 = vand.u32 %v823, 2147483648
        %v1273 = vor.u32 1.1754944e-38, %v1272
        %v1274 = vsel %vm1271, %v1273, %v1269
        %v1275 = vmul.f32 1.0, %v1274
        %v1276 = vrcp.pop %v824
        %v1277 = vmul.f32 %v824, %v1276
        %v1278 = vsub.f32 1.0, %v1277
        %v1279 = vmul.f32 %v1276, %v1278
        %v1280 = vadd.f32 %v1276, %v1279
        %vm1281 = vweird.f32 %v824
        %vm1282 = vweird.f32 %v1276
        %vm1283 = vmor %vm1281, %vm1282
        %v1284 = vsel %vm1283, %v1276, %v1280
        %v1285 = vand.u32 2147483647, %v824
        %vm1286 = vcmp.eq.f32.partialorder %v1285, 8.507059e+37
        %v1287 = vand.u32 %v824, 2147483648
        %v1288 = vor.u32 1.1754944e-38, %v1287
        %v1289 = vsel %vm1286, %v1288, %v1284
        %v1290 = vmul.f32 1.0, %v1289
        %v1291 = vrcp.pop %v825
        %v1292 = vmul.f32 %v825, %v1291
        %v1293 = vsub.f32 1.0, %v1292
        %v1294 = vmul.f32 %v1291, %v1293
        %v1295 = vadd.f32 %v1291, %v1294
        %vm1296 = vweird.f32 %v825
        %vm1297 = vweird.f32 %v1291
        %vm1298 = vmor %vm1296, %vm1297
        %v1299 = vsel %vm1298, %v1291, %v1295
        %v1300 = vand.u32 2147483647, %v825
        %vm1301 = vcmp.eq.f32.partialorder %v1300, 8.507059e+37
        %v1302 = vand.u32 %v825, 2147483648
        %v1303 = vor.u32 1.1754944e-38, %v1302
        %v1304 = vsel %vm1301, %v1303, %v1299
        %v1305 = vmul.f32 1.0, %v1304
        %v1306 = vmul.f32 %v619, %v840
        %v1307 = vmul.f32 %v621, %v855
        %v1308 = vmul.f32 %v624, %v870
        %v1309 = vmul.f32 %v626, %v885
        %v1310 = vmul.f32 %v629, %v900
        %v1311 = vmul.f32 %v631, %v915
        %v1312 = vmul.f32 %v634, %v930
        %v1313 = vmul.f32 %v636, %v945
        %v1314 = vmul.f32 %v639, %v960
        %v1315 = vmul.f32 %v641, %v975
        %v1316 = vmul.f32 %v644, %v990
        %v1317 = vmul.f32 %v646, %v1005
        %v1318 = vmul.f32 %v649, %v1020
        %v1319 = vmul.f32 %v651, %v1035
        %v1320 = vmul.f32 %v654, %v1050
        %v1321 = vmul.f32 %v656, %v1065
        %v1322 = vmul.f32 %v659, %v1080
        %v1323 = vmul.f32 %v661, %v1095
        %v1324 = vmul.f32 %v664, %v1110
        %v1325 = vmul.f32 %v666, %v1125
        %v1326 = vmul.f32 %v669, %v1140
        %v1327 = vmul.f32 %v671, %v1155
        %v1328 = vmul.f32 %v674, %v1170
        %v1329 = vmul.f32 %v676, %v1185
        %v1330 = vmul.f32 %v679, %v1200
        %v1331 = vmul.f32 %v681, %v1215
        %v1332 = vmul.f32 %v684, %v1230
        %v1333 = vmul.f32 %v686, %v1245
        %v1334 = vmul.f32 %v689, %v1260
        %v1335 = vmul.f32 %v691, %v1275
        %v1336 = vmul.f32 %v694, %v1290
        %v1337 = vmul.f32 %v696, %v1305
        %v1338 = vld [vmem:[#allocation2] sm:$0xff]
        %v1339 = vld [vmem:[#allocation2 + $0x8] sm:$0xff]
        %v1340 = vld [vmem:[#allocation2 + $0x10] sm:$0xff]
        %v1341 = vld [vmem:[#allocation2 + $0x18] sm:$0xff]
        %v1342 = vld [vmem:[#allocation2 + $0x20] sm:$0xff]
        %v1343 = vld [vmem:[#allocation2 + $0x28] sm:$0xff]
        %v1344 = vld [vmem:[#allocation2 + $0x30] sm:$0xff]
        %v1345 = vld [vmem:[#allocation2 + $0x38] sm:$0xff]
        %v1346 = vld [vmem:[#allocation2 + $0x40] sm:$0xff]
        %v1347 = vld [vmem:[#allocation2 + $0x48] sm:$0xff]
        %v1348 = vld [vmem:[#allocation2 + $0x50] sm:$0xff]
        %v1349 = vld [vmem:[#allocation2 + $0x58] sm:$0xff]
        %v1350 = vld [vmem:[#allocation2 + $0x60] sm:$0xff]
        %v1351 = vld [vmem:[#allocation2 + $0x68] sm:$0xff]
        %v1352 = vld [vmem:[#allocation2 + $0x70] sm:$0xff]
        %v1353 = vld [vmem:[#allocation2 + $0x78] sm:$0xff]
        %v1354 = vpack.c.bf16 %v1307, %v1306
        %v1355 = vpack.c.bf16 %v1309, %v1308
        %v1356 = vpack.c.bf16 %v1311, %v1310
        %v1357 = vpack.c.bf16 %v1313, %v1312
        %v1358 = vpack.c.bf16 %v1315, %v1314
        %v1359 = vpack.c.bf16 %v1317, %v1316
        %v1360 = vpack.c.bf16 %v1319, %v1318
        %v1361 = vpack.c.bf16 %v1321, %v1320
        %v1362 = vpack.c.bf16 %v1323, %v1322
        %v1363 = vpack.c.bf16 %v1325, %v1324
        %v1364 = vpack.c.bf16 %v1327, %v1326
        %v1365 = vpack.c.bf16 %v1329, %v1328
        %v1366 = vpack.c.bf16 %v1331, %v1330
        %v1367 = vpack.c.bf16 %v1333, %v1332
        %v1368 = vpack.c.bf16 %v1335, %v1334
        %v1369 = vpack.c.bf16 %v1337, %v1336
        %v1370 = vld [vmem:[%s4] sm:$0xff]
        %v1371 = vld [vmem:[%s4 + $0x8] sm:$0xff]
        %v1372 = vld [vmem:[%s4 + $0x10] sm:$0xff]
        %v1373 = vld [vmem:[%s4 + $0x18] sm:$0xff]
        %v1374 = vld [vmem:[%s4 + $0x20] sm:$0xff]
        %v1375 = vld [vmem:[%s4 + $0x28] sm:$0xff]
        %v1376 = vld [vmem:[%s4 + $0x30] sm:$0xff]
        %v1377 = vld [vmem:[%s4 + $0x38] sm:$0xff]
        %v1378 = vld [vmem:[%s4 + $0x40] sm:$0xff]
        %v1379 = vld [vmem:[%s4 + $0x48] sm:$0xff]
        %v1380 = vld [vmem:[%s4 + $0x50] sm:$0xff]
        %v1381 = vld [vmem:[%s4 + $0x58] sm:$0xff]
        %v1382 = vld [vmem:[%s4 + $0x60] sm:$0xff]
        %v1383 = vld [vmem:[%s4 + $0x68] sm:$0xff]
        %v1384 = vld [vmem:[%s4 + $0x70] sm:$0xff]
        %v1385 = vld [vmem:[%s4 + $0x78] sm:$0xff]
        %1387 = vset.pattern.permute.xlu0 0
        %1388 = vperm.xlu0 %1387, %v1370
        %v1389 = vpop.permute.xlu0 %1388
        %1392 = vset.pattern.permute.xlu0 0
        %1393 = vperm.xlu0 %1392, %v1371
        %v1394 = vpop.permute.xlu0 %1393
        %1397 = vset.pattern.permute.xlu0 0
        %1398 = vperm.xlu0 %1397, %v1372
        %v1399 = vpop.permute.xlu0 %1398
        %1402 = vset.pattern.permute.xlu0 0
        %1403 = vperm.xlu0 %1402, %v1373
        %v1404 = vpop.permute.xlu0 %1403
        %1407 = vset.pattern.permute.xlu0 0
        %1408 = vperm.xlu0 %1407, %v1374
        %v1409 = vpop.permute.xlu0 %1408
        %1412 = vset.pattern.permute.xlu0 0
        %1413 = vperm.xlu0 %1412, %v1375
        %v1414 = vpop.permute.xlu0 %1413
        %1417 = vset.pattern.permute.xlu0 0
        %1418 = vperm.xlu0 %1417, %v1376
        %v1419 = vpop.permute.xlu0 %1418
        %1422 = vset.pattern.permute.xlu0 0
        %1423 = vperm.xlu0 %1422, %v1377
        %v1424 = vpop.permute.xlu0 %1423
        %1427 = vset.pattern.permute.xlu0 0
        %1428 = vperm.xlu0 %1427, %v1378
        %v1429 = vpop.permute.xlu0 %1428
        %1432 = vset.pattern.permute.xlu0 0
        %1433 = vperm.xlu0 %1432, %v1379
        %v1434 = vpop.permute.xlu0 %1433
        %1437 = vset.pattern.permute.xlu0 0
        %1438 = vperm.xlu0 %1437, %v1380
        %v1439 = vpop.permute.xlu0 %1438
        %1442 = vset.pattern.permute.xlu0 0
        %1443 = vperm.xlu0 %1442, %v1381
        %v1444 = vpop.permute.xlu0 %1443
        %1447 = vset.pattern.permute.xlu0 0
        %1448 = vperm.xlu0 %1447, %v1382
        %v1449 = vpop.permute.xlu0 %1448
        %1452 = vset.pattern.permute.xlu0 0
        %1453 = vperm.xlu0 %1452, %v1383
        %v1454 = vpop.permute.xlu0 %1453
        %1457 = vset.pattern.permute.xlu0 0
        %1458 = vperm.xlu0 %1457, %v1384
        %v1459 = vpop.permute.xlu0 %1458
        %1462 = vset.pattern.permute.xlu0 0
        %1463 = vperm.xlu0 %1462, %v1385
        %v1464 = vpop.permute.xlu0 %1463
        %v1482 = vunpack.c.l.b16 %v1338
        %v1483 = vunpack.c.h.b16 %v1338
        %v1484 = vunpack.c.l.b16 %v1339
        %v1485 = vunpack.c.h.b16 %v1339
        %v1486 = vunpack.c.l.b16 %v1340
        %v1487 = vunpack.c.h.b16 %v1340
        %v1488 = vunpack.c.l.b16 %v1341
        %v1489 = vunpack.c.h.b16 %v1341
        %v1490 = vunpack.c.l.b16 %v1342
        %v1491 = vunpack.c.h.b16 %v1342
        %v1492 = vunpack.c.l.b16 %v1343
        %v1493 = vunpack.c.h.b16 %v1343
        %v1494 = vunpack.c.l.b16 %v1344
        %v1495 = vunpack.c.h.b16 %v1344
        %v1496 = vunpack.c.l.b16 %v1345
        %v1497 = vunpack.c.h.b16 %v1345
        %v1498 = vunpack.c.l.b16 %v1346
        %v1499 = vunpack.c.h.b16 %v1346
        %v1500 = vunpack.c.l.b16 %v1347
        %v1501 = vunpack.c.h.b16 %v1347
        %v1502 = vunpack.c.l.b16 %v1348
        %v1503 = vunpack.c.h.b16 %v1348
        %v1504 = vunpack.c.l.b16 %v1349
        %v1505 = vunpack.c.h.b16 %v1349
        %v1506 = vunpack.c.l.b16 %v1350
        %v1507 = vunpack.c.h.b16 %v1350
        %v1508 = vunpack.c.l.b16 %v1351
        %v1509 = vunpack.c.h.b16 %v1351
        %v1510 = vunpack.c.l.b16 %v1352
        %v1511 = vunpack.c.h.b16 %v1352
        %v1512 = vunpack.c.l.b16 %v1353
        %v1513 = vunpack.c.h.b16 %v1353
        %v1514 = vpack.c.b16 %v1484, %v1482
        %v1515 = vpack.c.b16 %v1485, %v1483
        %v1516 = vpack.c.b16 %v1488, %v1486
        %v1517 = vpack.c.b16 %v1489, %v1487
        %v1518 = vpack.c.b16 %v1492, %v1490
        %v1519 = vpack.c.b16 %v1493, %v1491
        %v1520 = vpack.c.b16 %v1496, %v1494
        %v1521 = vpack.c.b16 %v1497, %v1495
        %v1522 = vpack.c.b16 %v1500, %v1498
        %v1523 = vpack.c.b16 %v1501, %v1499
        %v1524 = vpack.c.b16 %v1504, %v1502
        %v1525 = vpack.c.b16 %v1505, %v1503
        %v1526 = vpack.c.b16 %v1508, %v1506
        %v1527 = vpack.c.b16 %v1509, %v1507
        %v1528 = vpack.c.b16 %v1512, %v1510
        %v1529 = vpack.c.b16 %v1513, %v1511
        %1546 = vmatpush.bf16.msra.mxu0 %v1361
        %1547 = vmatpush.bf16.msra.mxu0 %v1360
        %1548 = vmatpush.bf16.msra.mxu0 %v1359
        %1549 = vmatpush.bf16.msra.mxu0 %v1358
        %1550 = vmatpush.bf16.msra.mxu0 %v1357
        %1551 = vmatpush.bf16.msra.mxu0 %v1356
        %1552 = vmatpush.bf16.msra.mxu0 %v1355
        %1553 = vmatpush.bf16.msra.mxu0 %v1354
        %1554 = vmatmul.bf16.gmra.mxu0 %v1514
        %v1555 = vpop.f32.mrf.mxu0
        %v1556 = vadd.f32 %v1389, %v1555
        %v1557 = vpop.f32.mrf.mxu0
        %v1558 = vadd.f32 %v1394, %v1557
        %1559 = vmatmul.bf16.gmra.mxu0 %v1516
        %v1560 = vpop.f32.mrf.mxu0
        %v1561 = vadd.f32 %v1399, %v1560
        %v1562 = vpop.f32.mrf.mxu0
        %v1563 = vadd.f32 %v1404, %v1562
        %1564 = vmatmul.bf16.gmra.mxu0 %v1518
        %v1565 = vpop.f32.mrf.mxu0
        %v1566 = vadd.f32 %v1409, %v1565
        %v1567 = vpop.f32.mrf.mxu0
        %v1568 = vadd.f32 %v1414, %v1567
        %1569 = vmatmul.bf16.gmra.mxu0 %v1520
        %v1570 = vpop.f32.mrf.mxu0
        %v1571 = vadd.f32 %v1419, %v1570
        %v1572 = vpop.f32.mrf.mxu0
        %v1573 = vadd.f32 %v1424, %v1572
        %1574 = vmatmul.bf16.gmra.mxu0 %v1522
        %v1575 = vpop.f32.mrf.mxu0
        %v1576 = vadd.f32 %v1429, %v1575
        %v1577 = vpop.f32.mrf.mxu0
        %v1578 = vadd.f32 %v1434, %v1577
        %1579 = vmatmul.bf16.gmra.mxu0 %v1524
        %v1580 = vpop.f32.mrf.mxu0
        %v1581 = vadd.f32 %v1439, %v1580
        %v1582 = vpop.f32.mrf.mxu0
        %v1583 = vadd.f32 %v1444, %v1582
        %1584 = vmatmul.bf16.gmra.mxu0 %v1526
        %v1585 = vpop.f32.mrf.mxu0
        %v1586 = vadd.f32 %v1449, %v1585
        %v1587 = vpop.f32.mrf.mxu0
        %v1588 = vadd.f32 %v1454, %v1587
        %1589 = vmatmul.bf16.gmra.mxu0 %v1528
        %v1590 = vpop.f32.mrf.mxu0
        %v1591 = vadd.f32 %v1459, %v1590
        %v1592 = vpop.f32.mrf.mxu0
        %v1593 = vadd.f32 %v1464, %v1592
        %1594 = vdwg.mxu0
        %1595 = vmatpush.bf16.msra.mxu0 %v1369
        %1596 = vmatpush.bf16.msra.mxu0 %v1368
        %1597 = vmatpush.bf16.msra.mxu0 %v1367
        %1598 = vmatpush.bf16.msra.mxu0 %v1366
        %1599 = vmatpush.bf16.msra.mxu0 %v1365
        %1600 = vmatpush.bf16.msra.mxu0 %v1364
        %1601 = vmatpush.bf16.msra.mxu0 %v1363
        %1602 = vmatpush.bf16.msra.mxu0 %v1362
        %1603 = vmatmul.bf16.gmra.mxu0 %v1515
        %v1604 = vpop.f32.mrf.mxu0
        %v1605 = vadd.f32 %v1556, %v1604
        %v1606 = vpop.f32.mrf.mxu0
        %v1607 = vadd.f32 %v1558, %v1606
        %1608 = vmatmul.bf16.gmra.mxu0 %v1517
        %v1609 = vpop.f32.mrf.mxu0
        %v1610 = vadd.f32 %v1561, %v1609
        %v1611 = vpop.f32.mrf.mxu0
        %v1612 = vadd.f32 %v1563, %v1611
        %1613 = vmatmul.bf16.gmra.mxu0 %v1519
        %v1614 = vpop.f32.mrf.mxu0
        %v1615 = vadd.f32 %v1566, %v1614
        %v1616 = vpop.f32.mrf.mxu0
        %v1617 = vadd.f32 %v1568, %v1616
        %1618 = vmatmul.bf16.gmra.mxu0 %v1521
        %v1619 = vpop.f32.mrf.mxu0
        %v1620 = vadd.f32 %v1571, %v1619
        %v1621 = vpop.f32.mrf.mxu0
        %v1622 = vadd.f32 %v1573, %v1621
        %1623 = vmatmul.bf16.gmra.mxu0 %v1523
        %v1624 = vpop.f32.mrf.mxu0
        %v1625 = vadd.f32 %v1576, %v1624
        %v1626 = vpop.f32.mrf.mxu0
        %v1627 = vadd.f32 %v1578, %v1626
        %1628 = vmatmul.bf16.gmra.mxu0 %v1525
        %v1629 = vpop.f32.mrf.mxu0
        %v1630 = vadd.f32 %v1581, %v1629
        %v1631 = vpop.f32.mrf.mxu0
        %v1632 = vadd.f32 %v1583, %v1631
        %1633 = vmatmul.bf16.gmra.mxu0 %v1527
        %v1634 = vpop.f32.mrf.mxu0
        %v1635 = vadd.f32 %v1586, %v1634
        %v1636 = vpop.f32.mrf.mxu0
        %v1637 = vadd.f32 %v1588, %v1636
        %1638 = vmatmul.bf16.gmra.mxu0 %v1529
        %v1639 = vpop.f32.mrf.mxu0
        %v1640 = vadd.f32 %v1591, %v1639
        %v1641 = vpop.f32.mrf.mxu0
        %v1642 = vadd.f32 %v1593, %v1641
        %1643 = vdwg.mxu0
        %1644 = vst [vmem:[%s256] sm:$0xff] %v1605
        %1645 = vst [vmem:[%s256 + $0x8] sm:$0xff] %v1607
        %1646 = vst [vmem:[%s256 + $0x10] sm:$0xff] %v1610
        %1647 = vst [vmem:[%s256 + $0x18] sm:$0xff] %v1612
        %1648 = vst [vmem:[%s256 + $0x20] sm:$0xff] %v1615
        %1649 = vst [vmem:[%s256 + $0x28] sm:$0xff] %v1617
        %1650 = vst [vmem:[%s256 + $0x30] sm:$0xff] %v1620
        %1651 = vst [vmem:[%s256 + $0x38] sm:$0xff] %v1622
        %1652 = vst [vmem:[%s256 + $0x40] sm:$0xff] %v1625
        %1653 = vst [vmem:[%s256 + $0x48] sm:$0xff] %v1627
        %1654 = vst [vmem:[%s256 + $0x50] sm:$0xff] %v1630
        %1655 = vst [vmem:[%s256 + $0x58] sm:$0xff] %v1632
        %1656 = vst [vmem:[%s256 + $0x60] sm:$0xff] %v1635
        %1657 = vst [vmem:[%s256 + $0x68] sm:$0xff] %v1637
        %1658 = vst [vmem:[%s256 + $0x70] sm:$0xff] %v1640
        %1659 = vst [vmem:[%s256 + $0x78] sm:$0xff] %v1642
        %s1660 = sand.u32 %s154, 1
        %s1661 = scalar_lea.sflag [#allocation4], %s1660
        %s1662 = sand.u32 %s154, 1
        %s1663 = smul.addr %s1662, 128
        %s1664 = scalar_lea.vmem [#allocation5], %s1663
        // Predicated region
        $region45: #{tpu_custom_call.1} parent=39 // pred_check
          %p1665 = pneg %p164
        $region46: #{tpu_custom_call.1} parent=39 // pred_check_branch
          %1667 = sbr.rel (%p1665) target = $region48
        $region47: #{tpu_custom_call.1} parent=39 // pred_region
          %1669 = vsyncadd %s1661, 0
          %s1670 = smul.addr %s24, 16
          %s1671 = sadd.s32 %s25, %s1670
          %s1672 = smul.addr %s1671, 8
          %s1673 = scalar_lea.hbm %s5, %s1672
          %s1674 = sshll.u32 %s1664, 4
          %s1675 = int_to_ptr.vmem [resolvable:$true] %s1674
          %s1676 = sshll.u32 %s1673, 4
          %s1677 = int_to_ptr.hbm [resolvable:$true] %s1676
          %1682 = dma.vmem_to_hbm [thread:$0]  %s1675, 2048, %s1677, %s1661, 128, 128, 8
        $region48: #{tpu_custom_call.1} parent=39 // pred_fallthru
          _
      $region40: #{tpu_custom_call.1} parent=5 // pred_fallthru
        _
      %p1683 = scmp.le.s32.totalorder 2, %s15
      // Predicated region
      $region49: #{tpu_custom_call.1} parent=5 // pred_check
        %p1684 = pneg %p1683
      $region50: #{tpu_custom_call.1} parent=5 // pred_check_branch
        %1686 = sbr.rel (%p1684) target = $region52
      $region51: #{tpu_custom_call.1} parent=5 // pred_region
        %s1687 = ssub.s32 %s15, 2
        // Predicated region
        $region53: #{tpu_custom_call.1} parent=51 // pred_check
          %p1688 = pneg %p170
        $region54: #{tpu_custom_call.1} parent=51 // pred_check_branch
          %1690 = sbr.rel (%p1688) target = $region56
        $region55: #{tpu_custom_call.1} parent=51 // pred_region
          %s1691 = sand.u32 %s155, 1
          %s1692 = scalar_lea.sflag [#allocation4], %s1691
          %s1693 = sand.u32 %s155, 1
          %s1694 = smul.addr %s1693, 128
          %s1695 = scalar_lea.vmem [#allocation5], %s1694
          %1697 = dma.done %s1692, 2048
        $region56: #{tpu_custom_call.1} parent=51 // pred_fallthru
          _
      $region52: #{tpu_custom_call.1} parent=5 // pred_fallthru
        _
    $region6: #{tpu_custom_call.1} parent=1 // loop_footer
      %s19 = sadd.s32 1, %s15
    $region7: #{tpu_custom_call.1} parent=1 // loop_footer_branch
      %14 = sbr.rel target = $region3
    $region8: #{tpu_custom_call.1} parent=1 // loop_exit
      _
    %1698 = vsyncpa [#allocation3], 1
    %s1699 = scalar_lea.sflag [#allocation3], 1
    %1700 = vsyncpa %s1699, 1
    %1701 = vsyncpa [#allocation4], 1
    %s1702 = scalar_lea.sflag [#allocation4], 1
    %1703 = vsyncpa %s1702, 1

</llo_original>
